<compile_context>
chip_gen: v7x
topology: tpu7x:2x2x1
jax: 0.10.0
libtpu: 0.0.40
codegen_flags: <defaults>
</compile_context>

<pallas_src>
import functools

import jax
import jax.numpy as jnp
import numpy as np
from jax.experimental import pallas as pl
from jax.experimental.pallas import tpu as pltpu

LANE = 128
BN_EPS = 1e-5


def _round_up(x, m):
    return (x + m - 1) // m * m


# ----------------------------------------------------------------------------
# Fused Pallas kernel: grid = (graph groups ['parallel'], layers ['arbitrary'])
# ----------------------------------------------------------------------------
def _fused_encoder_kernel(a_ref, h0_ref, w_ref, wself_ref, b_ref, out_ref,
                          h_ref, hw_ref, *, num_rels, n_nodes):
    """
    a_ref     : [Ng, R*Ng]   bf16  concat adjacency of this graph group
    h0_ref    : [Ng, Kp]     f32   zero-padded input node features (group)
    w_ref     : [R, Kp, Fp]  bf16  BN-folded relation weights of layer l
    wself_ref : [Kp, Fp]     bf16  BN-folded self-loop weight of layer l
    b_ref     : [1, Fp]      f32   BN-folded bias of layer l
    out_ref   : [Ng, Fp]     f32   final node embeddings of this group
    h_ref     : [Ng, Kp]     f32   scratch: activations carried across layers
    hw_ref    : [R*Ng, Fp]   bf16  scratch: stacked per-relation projections
    """
    layer = pl.program_id(1)
    last = pl.num_programs(1) - 1

    @pl.when(layer == 0)
    def _():                                    # new graph group: load its h0
        h_ref[...] = h0_ref[...]

    hk = h_ref[...].astype(jnp.bfloat16)        # [Ng, Kp] compact-K operand

    # Stack per-relation projections h @ W'_r.  Static unroll keeps the 8
    # lane-dense stores visible to the LLO scheduler (interleave with MXU).
    for r in range(num_rels):
        hw_ref[pl.ds(r * n_nodes, n_nodes), :] = jnp.dot(
            hk, w_ref[r], preferred_element_type=jnp.float32
        ).astype(hw_ref.dtype)

    # Relation-summed aggregation as ONE matmul with K = R*Ng.
    out = jnp.dot(a_ref[...], hw_ref[...], preferred_element_type=jnp.float32)
    out = out + jnp.dot(hk, wself_ref[...], preferred_element_type=jnp.float32)
    out = out + b_ref[...]

    @pl.when(layer < last)
    def _():                                    # carry activations in VMEM
        h_ref[...] = out[:, :h_ref.shape[1]]    # padded cols beyond Kp are 0

    @pl.when(layer == last)
    def _():                                    # ReLU only after final layer
        out_ref[...] = jnp.maximum(out, 0.0)


def rna_encoder_fused_call(a_cat, h0, w, wself, b):
    g_groups, n_nodes, _ = a_cat.shape
    num_layers, num_rels, k_pad, f_pad = w.shape

    kernel = functools.partial(_fused_encoder_kernel,
                               num_rels=num_rels, n_nodes=n_nodes)

    flops = 2 * g_groups * num_layers * (
        num_rels * n_nodes * k_pad * f_pad            # projections
        + n_nodes * (num_rels * n_nodes) * f_pad      # aggregation
        + n_nodes * k_pad * f_pad)                    # self-loop
    bytes_accessed = sum(int(x.size) * x.dtype.itemsize
                         for x in (a_cat, h0, w, wself, b))
    bytes_accessed += g_groups * n_nodes * f_pad * 4  # output

    # TODO(synk): for large graphs (N in the thousands) the dense adjacency
    # must be dst-tiled or replaced by an edge-list gather (scalar prefetch);
    # budget tiles against 64 MiB VMEM on v7x, not 128 MiB.
    return pl.pallas_call(
        kernel,
        out_shape=jax.ShapeDtypeStruct((g_groups, n_nodes, f_pad), jnp.float32),
        grid_spec=pltpu.PrefetchScalarGridSpec(
            num_scalar_prefetch=0,
            grid=(g_groups, num_layers),              # layers innermost
            in_specs=[
                pl.BlockSpec((None, n_nodes, num_rels * n_nodes),
                             lambda g, l: (g, 0, 0)),
                pl.BlockSpec((None, n_nodes, k_pad), lambda g, l: (g, 0, 0)),
                pl.BlockSpec((None, num_rels, k_pad, f_pad),
                             lambda g, l: (l, 0, 0, 0)),
                pl.BlockSpec((None, k_pad, f_pad), lambda g, l: (l, 0, 0)),
                pl.BlockSpec((None, 1, f_pad), lambda g, l: (l, 0, 0)),
            ],
            out_specs=pl.BlockSpec((None, n_nodes, f_pad),
                                   lambda g, l: (g, 0, 0)),
            scratch_shapes=[
                pltpu.VMEM((n_nodes, k_pad), jnp.float32),           # h carry
                pltpu.VMEM((num_rels * n_nodes, f_pad), jnp.bfloat16),  # hw
            ],
        ),
        compiler_params=pltpu.CompilerParams(
            dimension_semantics=("parallel", "arbitrary")),
        cost_estimate=pl.CostEstimate(flops=flops, transcendentals=0,
                                      bytes_accessed=int(bytes_accessed)),
    )(a_cat, h0, w, wself, b)


# ----------------------------------------------------------------------------
# One-time parameter preparation (basis decomposition + BN fold + compact pad)
# ----------------------------------------------------------------------------
def prepare_fused_params(params, k_pad, f_pad, weight_dtype=jnp.bfloat16):
    """Returns stacked, BN-folded weights with compact contraction dim:
       w [L, R, Kp, Fp] bf16, wself [L, Kp, Fp] bf16, bias [L, 1, Fp] f32."""
    w_all, wself_all, b_all = [], [], []
    for p in params:
        W = jnp.einsum("rb,bio->rio", p["comp"], p["bases"])        # [R, di, do]
        R, di, do = W.shape
        scale = p["gamma"] * jax.lax.rsqrt(p["run_var"] + BN_EPS)   # [1, do]
        bias_f = (p["bias"] - p["run_mean"]) * scale + p["beta"]    # [1, do]
        Wf = W * scale                      # fold BN scale into output columns
        Wsf = p["w_self"] * scale
        w_all.append(jnp.zeros((R, k_pad, f_pad), jnp.float32)
                     .at[:, :di, :do].set(Wf))
        wself_all.append(jnp.zeros((k_pad, f_pad), jnp.float32)
                         .at[:di, :do].set(Wsf))
        b_all.append(jnp.zeros((1, f_pad), jnp.float32)
                     .at[:, :do].set(bias_f))
    w = jnp.stack(w_all).astype(weight_dtype)
    wself = jnp.stack(wself_all).astype(weight_dtype)
    b = jnp.stack(b_all)                     # keep bias in f32
    return w, wself, b


# ----------------------------------------------------------------------------
# Parameter setup (deterministic, synthetic) + full encoder forward
# ----------------------------------------------------------------------------
def init_params(key, in_dim, hidden_dim, num_layers, num_rels, num_bases):
    params = []
    dims = [in_dim] + [hidden_dim] * num_layers
    for li in range(num_layers):
        key, *ks = jax.random.split(key, 9)
        di, do = dims[li], dims[li + 1]
        params.append({
            "bases": 0.1 * jax.random.normal(ks[0], (num_bases, di, do), jnp.float32),
            "comp": 0.1 * jax.random.normal(ks[1], (num_rels, num_bases), jnp.float32),
            "w_self": 0.1 * jax.random.normal(ks[2], (di, do), jnp.float32),
            "bias": 0.05 * jax.random.normal(ks[3], (1, do), jnp.float32),
            "gamma": 1.0 + 0.05 * jax.random.normal(ks[4], (1, do), jnp.float32),
            "beta": 0.05 * jax.random.normal(ks[5], (1, do), jnp.float32),
            "run_mean": 0.05 * jax.random.normal(ks[6], (1, do), jnp.float32),
            "run_var": 0.5 + jnp.abs(0.5 * jax.random.normal(ks[7], (1, do), jnp.float32)),
        })
    return params


def rna_encoder_forward(A_grouped, nt_features, pocket_idx, params,
                        num_hidden_layers, hidden_dim):
    """Forward pass of RNAEncoder (eval mode: dropout = identity).

    A_grouped   : [G, R, Ng, Ng] dense per-relation block-diagonal adjacency
    nt_features : [G, Ng, in_dim]
    pocket_idx  : host-precomputed int indices of in-pocket nodes (static)
    """
    G, R, Ng, _ = A_grouped.shape
    in_dim = nt_features.shape[-1]
    assert len(params) == num_hidden_layers + 1
    k_pad = _round_up(max(in_dim, hidden_dim), 8)       # compact contraction dim
    f_pad = _round_up(max(hidden_dim, LANE), LANE)      # lane-dense output dim

    # One-time prep (off the kernel path in a real deployment: cache these).
    w, wself, b = prepare_fused_params(params, k_pad, f_pad)

    # Concatenated adjacency: a_cat[g, v, r*Ng + u] = A[g, r, v, u] (exact in bf16).
    a_cat = jnp.transpose(A_grouped, (0, 2, 1, 3)).reshape(G, Ng, R * Ng)
    a_cat = a_cat.astype(jnp.bfloat16)

    # Zero-pad input features only to the compact K width (multiple of 8).
    h0 = jnp.zeros((G, Ng, k_pad), jnp.float32).at[..., :in_dim].set(nt_features)

    h_pad = rna_encoder_fused_call(a_cat, h0, w, wself, b)
    h = h_pad.reshape(G * Ng, f_pad)[:, :hidden_dim]

    # subset_pocket_nodes: static integer-index gather (no host sync, no
    # dynamic-shape boolean gather on the forward path).
    # TODO(synk): DGL graph re-batching (dgl.node_subgraph / dgl.batch) has no
    # Pallas/array equivalent; only the node-embedding subset is returned.
    embeddings = jnp.take(h, jnp.asarray(pocket_idx), axis=0)
    return embeddings, h


def reference_forward(A, x, params, num_hidden_layers):
    """Pure-JAX f32 reference for correctness checking (unfused BN)."""
    h = x
    for i, p in enumerate(params):
        W = jnp.einsum("rb,bio->rio", p["comp"], p["bases"])
        msgs = jnp.einsum("rvu,uf->rvf", A, h)            # per-relation sums
        out = jnp.einsum("rvf,rfo->vo", msgs, W)
        out = out + h @ p["w_self"] + p["bias"]
        out = (out - p["run_mean"]) * jax.lax.rsqrt(p["run_var"] + BN_EPS) \
              * p["gamma"] + p["beta"]
        if not (i < num_hidden_layers):
            out = jnp.maximum(out, 0.0)
        h = out
    return h


if __name__ == "__main__":
    # Small synthetic "batched RNA graph" set (DGL-style batching).
    IN_DIM, HIDDEN_DIM = 4, 32
    NUM_HIDDEN_LAYERS = 3                     # -> 4 RelGraphConv layers total
    NUM_RELS = 8
    NUM_BASES = NUM_RELS                      # num_bases == -1 in the module
    NODES_PER_GRAPH, EDGES_PER_GRAPH = 32, 96
    GRAPHS_PER_GROUP = 4                      # batched graphs -> M = 128 per matmul
    NUM_GROUPS = 2                            # leading 'parallel' axis (2 TCs on v7x)
    NG = NODES_PER_GRAPH * GRAPHS_PER_GROUP   # 128 nodes per group
    N_TOTAL = NG * NUM_GROUPS                 # 256
    N_GRAPHS = GRAPHS_PER_GROUP * NUM_GROUPS

    key = jax.random.PRNGKey(0)
    k_feat, k_edges, k_pocket, k_params = jax.random.split(key, 4)

    nt_features = jax.random.normal(k_feat, (N_TOTAL, IN_DIM), jnp.float32)

    # Block-diagonal dense per-relation adjacency, grouped: A[g, r, dst, src].
    A = jnp.zeros((NUM_GROUPS, NUM_RELS, NG, NG), jnp.float32)
    edge_keys = jax.random.split(k_edges, 3 * N_GRAPHS)
    for gi in range(N_GRAPHS):
        grp, off = divmod(gi, GRAPHS_PER_GROUP)
        off *= NODES_PER_GRAPH
        src = jax.random.randint(edge_keys[3 * gi + 0], (EDGES_PER_GRAPH,),
                                 0, NODES_PER_GRAPH) + off
        dst = jax.random.randint(edge_keys[3 * gi + 1], (EDGES_PER_GRAPH,),
                                 0, NODES_PER_GRAPH) + off
        et = jax.random.randint(edge_keys[3 * gi + 2], (EDGES_PER_GRAPH,),
                                0, NUM_RELS)
        A = A.at[grp, et, dst, src].add(1.0)

    # in_pocket mask -> host-precomputed integer indices (static shape).
    in_pocket = np.asarray(jax.random.bernoulli(k_pocket, 0.5, (N_TOTAL,)))
    pocket_idx = np.flatnonzero(in_pocket).astype(np.int32)

    params = init_params(k_params, IN_DIM, HIDDEN_DIM,
                         NUM_HIDDEN_LAYERS + 1, NUM_RELS, NUM_BASES)

    feats_grouped = nt_features.reshape(NUM_GROUPS, NG, IN_DIM)
    embeddings, h_full = rna_encoder_forward(A, feats_grouped, pocket_idx,
                                             params, NUM_HIDDEN_LAYERS,
                                             HIDDEN_DIM)
    embeddings = jax.block_until_ready(embeddings)
    h_full = jax.block_until_ready(h_full)

    # Correctness check against pure-JAX f32 reference (kernel uses bf16
    # weights/adjacency -> relaxed tolerance).
    h_ref = jnp.concatenate(
        [reference_forward(A[g], feats_grouped[g], params, NUM_HIDDEN_LAYERS)
         for g in range(NUM_GROUPS)], axis=0)
    np.testing.assert_allclose(np.asarray(h_full), np.asarray(h_ref),
                               rtol=2e-2, atol=2e-2)
    np.testing.assert_allclose(np.asarray(embeddings),
                               np.asarray(h_ref)[pocket_idx],
                               rtol=2e-2, atol=2e-2)
    assert embeddings.shape == (pocket_idx.shape[0], HIDDEN_DIM)

    print("KERNEL_OK")
</pallas_src>

<mosaic_0001>
module attributes {stable_mosaic.version = 11 : i64} {
  func.func @_fused_encoder_kernel(%arg0: i32, %arg1: i32, %arg2: memref<1x128x1024xbf16, #tpu.memory_space<vmem>>, %arg3: memref<1x128x32xf32, #tpu.memory_space<vmem>>, %arg4: memref<1x8x32x128xbf16, #tpu.memory_space<vmem>>, %arg5: memref<1x32x128xbf16, #tpu.memory_space<vmem>>, %arg6: memref<1x1x128xf32, #tpu.memory_space<vmem>>, %arg7: memref<1x128x128xf32, #tpu.memory_space<vmem>>, %arg8: memref<128x32xf32, #tpu.memory_space<vmem>>, %arg9: memref<1024x128xbf16, #tpu.memory_space<vmem>>) attributes {dimension_semantics = [#tpu.dimension_semantics<parallel>, #tpu.dimension_semantics<arbitrary>], iteration_bounds = array<i64: 2, 4>, scalar_prefetch = 0 : i64, scratch_operands = 2 : i64, tpu.core_type = #tpu.core_type<tc>, window_params = [{transform_indices = @transform_0, window_bounds = array<i64: 1, 128, 1024>}, {transform_indices = @transform_1, window_bounds = array<i64: 1, 128, 32>}, {transform_indices = @transform_2, window_bounds = array<i64: 1, 8, 32, 128>}, {transform_indices = @transform_3, window_bounds = array<i64: 1, 32, 128>}, {transform_indices = @transform_4, window_bounds = array<i64: 1, 1, 128>}, {transform_indices = @transform_5, window_bounds = array<i64: 1, 128, 128>}]} {
    %c0_i32 = arith.constant 0 : i32
    %0 = arith.cmpi eq, %arg1, %c0_i32 : i32
    %1 = arith.extui %0 : i1 to i32
    %c0_i32_0 = arith.constant 0 : i32
    %2 = arith.cmpi ne, %1, %c0_i32_0 : i32
    scf.if %2 {
      %c0_59 = arith.constant 0 : index
      %c0_60 = arith.constant 0 : index
      %c0_61 = arith.constant 0 : index
      %63 = vector.load %arg3[%c0_59, %c0_60, %c0_61] : memref<1x128x32xf32, #tpu.memory_space<vmem>>, vector<1x128x32xf32>
      %64 = vector.shape_cast %63 : vector<1x128x32xf32> to vector<128x32xf32>
      %c0_62 = arith.constant 0 : index
      %c0_63 = arith.constant 0 : index
      %65 = vector.load %arg8[%c0_62, %c0_63] : memref<128x32xf32, #tpu.memory_space<vmem>>, vector<128x32xf32>
      tpu.vector_store %arg8[%c0_62, %c0_63], %64 {strides = array<i32>} : memref<128x32xf32, #tpu.memory_space<vmem>>, vector<128x32xf32>,
    } else {
    }
    %c0 = arith.constant 0 : index
    %c0_1 = arith.constant 0 : index
    %3 = vector.load %arg8[%c0, %c0_1] : memref<128x32xf32, #tpu.memory_space<vmem>>, vector<128x32xf32>
    %4 = arith.truncf %3 : vector<128x32xf32> to vector<128x32xbf16>
    %c0_2 = arith.constant 0 : index
    %c0_3 = arith.constant 0 : index
    %c0_4 = arith.constant 0 : index
    %c0_5 = arith.constant 0 : index
    %5 = vector.load %arg4[%c0_2, %c0_3, %c0_4, %c0_5] : memref<1x8x32x128xbf16, #tpu.memory_space<vmem>>, vector<1x1x32x128xbf16>
    %6 = vector.shape_cast %5 : vector<1x1x32x128xbf16> to vector<32x128xbf16>
    %cst = arith.constant dense<0.000000e+00> : vector<128x128xf32>
    %7 = tpu.matmul %4, %6, %cst {dimension_numbers = #tpu.dot_dimension_numbers<[1], [0], [0], [1], [0, 0, 1, 1], [], []>} : vector<128x32xbf16>, vector<32x128xbf16>, vector<128x128xf32> -> vector<128x128xf32>
    %8 = arith.truncf %7 : vector<128x128xf32> to vector<128x128xbf16>
    %c0_6 = arith.constant 0 : index
    %c0_7 = arith.constant 0 : index
    %9 = vector.load %arg9[%c0_6, %c0_7] : memref<1024x128xbf16, #tpu.memory_space<vmem>>, vector<128x128xbf16>
    tpu.vector_store %arg9[%c0_6, %c0_7], %8 {strides = array<i32>} : memref<1024x128xbf16, #tpu.memory_space<vmem>>, vector<128x128xbf16>,
    %c0_8 = arith.constant 0 : index
    %c1 = arith.constant 1 : index
    %c0_9 = arith.constant 0 : index
    %c0_10 = arith.constant 0 : index
    %10 = vector.load %arg4[%c0_8, %c1, %c0_9, %c0_10] : memref<1x8x32x128xbf16, #tpu.memory_space<vmem>>, vector<1x1x32x128xbf16>
    %11 = vector.shape_cast %10 : vector<1x1x32x128xbf16> to vector<32x128xbf16>
    %cst_11 = arith.constant dense<0.000000e+00> : vector<128x128xf32>
    %12 = tpu.matmul %4, %11, %cst_11 {dimension_numbers = #tpu.dot_dimension_numbers<[1], [0], [0], [1], [0, 0, 1, 1], [], []>} : vector<128x32xbf16>, vector<32x128xbf16>, vector<128x128xf32> -> vector<128x128xf32>
    %13 = arith.truncf %12 : vector<128x128xf32> to vector<128x128xbf16>
    %c128 = arith.constant 128 : index
    %c0_12 = arith.constant 0 : index
    %14 = vector.load %arg9[%c128, %c0_12] : memref<1024x128xbf16, #tpu.memory_space<vmem>>, vector<128x128xbf16>
    tpu.vector_store %arg9[%c128, %c0_12], %13 {strides = array<i32>} : memref<1024x128xbf16, #tpu.memory_space<vmem>>, vector<128x128xbf16>,
    %c0_13 = arith.constant 0 : index
    %c2 = arith.constant 2 : index
    %c0_14 = arith.constant 0 : index
    %c0_15 = arith.constant 0 : index
    %15 = vector.load %arg4[%c0_13, %c2, %c0_14, %c0_15] : memref<1x8x32x128xbf16, #tpu.memory_space<vmem>>, vector<1x1x32x128xbf16>
    %16 = vector.shape_cast %15 : vector<1x1x32x128xbf16> to vector<32x128xbf16>
    %cst_16 = arith.constant dense<0.000000e+00> : vector<128x128xf32>
    %17 = tpu.matmul %4, %16, %cst_16 {dimension_numbers = #tpu.dot_dimension_numbers<[1], [0], [0], [1], [0, 0, 1, 1], [], []>} : vector<128x32xbf16>, vector<32x128xbf16>, vector<128x128xf32> -> vector<128x128xf32>
    %18 = arith.truncf %17 : vector<128x128xf32> to vector<128x128xbf16>
    %c256 = arith.constant 256 : index
    %c0_17 = arith.constant 0 : index
    %19 = vector.load %arg9[%c256, %c0_17] : memref<1024x128xbf16, #tpu.memory_space<vmem>>, vector<128x128xbf16>
    tpu.vector_store %arg9[%c256, %c0_17], %18 {strides = array<i32>} : memref<1024x128xbf16, #tpu.memory_space<vmem>>, vector<128x128xbf16>,
    %c0_18 = arith.constant 0 : index
    %c3 = arith.constant 3 : index
    %c0_19 = arith.constant 0 : index
    %c0_20 = arith.constant 0 : index
    %20 = vector.load %arg4[%c0_18, %c3, %c0_19, %c0_20] : memref<1x8x32x128xbf16, #tpu.memory_space<vmem>>, vector<1x1x32x128xbf16>
    %21 = vector.shape_cast %20 : vector<1x1x32x128xbf16> to vector<32x128xbf16>
    %cst_21 = arith.constant dense<0.000000e+00> : vector<128x128xf32>
    %22 = tpu.matmul %4, %21, %cst_21 {dimension_numbers = #tpu.dot_dimension_numbers<[1], [0], [0], [1], [0, 0, 1, 1], [], []>} : vector<128x32xbf16>, vector<32x128xbf16>, vector<128x128xf32> -> vector<128x128xf32>
    %23 = arith.truncf %22 : vector<128x128xf32> to vector<128x128xbf16>
    %c384 = arith.constant 384 : index
    %c0_22 = arith.constant 0 : index
    %24 = vector.load %arg9[%c384, %c0_22] : memref<1024x128xbf16, #tpu.memory_space<vmem>>, vector<128x128xbf16>
    tpu.vector_store %arg9[%c384, %c0_22], %23 {strides = array<i32>} : memref<1024x128xbf16, #tpu.memory_space<vmem>>, vector<128x128xbf16>,
    %c0_23 = arith.constant 0 : index
    %c4 = arith.constant 4 : index
    %c0_24 = arith.constant 0 : index
    %c0_25 = arith.constant 0 : index
    %25 = vector.load %arg4[%c0_23, %c4, %c0_24, %c0_25] : memref<1x8x32x128xbf16, #tpu.memory_space<vmem>>, vector<1x1x32x128xbf16>
    %26 = vector.shape_cast %25 : vector<1x1x32x128xbf16> to vector<32x128xbf16>
    %cst_26 = arith.constant dense<0.000000e+00> : vector<128x128xf32>
    %27 = tpu.matmul %4, %26, %cst_26 {dimension_numbers = #tpu.dot_dimension_numbers<[1], [0], [0], [1], [0, 0, 1, 1], [], []>} : vector<128x32xbf16>, vector<32x128xbf16>, vector<128x128xf32> -> vector<128x128xf32>
    %28 = arith.truncf %27 : vector<128x128xf32> to vector<128x128xbf16>
    %c512 = arith.constant 512 : index
    %c0_27 = arith.constant 0 : index
    %29 = vector.load %arg9[%c512, %c0_27] : memref<1024x128xbf16, #tpu.memory_space<vmem>>, vector<128x128xbf16>
    tpu.vector_store %arg9[%c512, %c0_27], %28 {strides = array<i32>} : memref<1024x128xbf16, #tpu.memory_space<vmem>>, vector<128x128xbf16>,
    %c0_28 = arith.constant 0 : index
    %c5 = arith.constant 5 : index
    %c0_29 = arith.constant 0 : index
    %c0_30 = arith.constant 0 : index
    %30 = vector.load %arg4[%c0_28, %c5, %c0_29, %c0_30] : memref<1x8x32x128xbf16, #tpu.memory_space<vmem>>, vector<1x1x32x128xbf16>
    %31 = vector.shape_cast %30 : vector<1x1x32x128xbf16> to vector<32x128xbf16>
    %cst_31 = arith.constant dense<0.000000e+00> : vector<128x128xf32>
    %32 = tpu.matmul %4, %31, %cst_31 {dimension_numbers = #tpu.dot_dimension_numbers<[1], [0], [0], [1], [0, 0, 1, 1], [], []>} : vector<128x32xbf16>, vector<32x128xbf16>, vector<128x128xf32> -> vector<128x128xf32>
    %33 = arith.truncf %32 : vector<128x128xf32> to vector<128x128xbf16>
    %c640 = arith.constant 640 : index
    %c0_32 = arith.constant 0 : index
    %34 = vector.load %arg9[%c640, %c0_32] : memref<1024x128xbf16, #tpu.memory_space<vmem>>, vector<128x128xbf16>
    tpu.vector_store %arg9[%c640, %c0_32], %33 {strides = array<i32>} : memref<1024x128xbf16, #tpu.memory_space<vmem>>, vector<128x128xbf16>,
    %c0_33 = arith.constant 0 : index
    %c6 = arith.constant 6 : index
    %c0_34 = arith.constant 0 : index
    %c0_35 = arith.constant 0 : index
    %35 = vector.load %arg4[%c0_33, %c6, %c0_34, %c0_35] : memref<1x8x32x128xbf16, #tpu.memory_space<vmem>>, vector<1x1x32x128xbf16>
    %36 = vector.shape_cast %35 : vector<1x1x32x128xbf16> to vector<32x128xbf16>
    %cst_36 = arith.constant dense<0.000000e+00> : vector<128x128xf32>
    %37 = tpu.matmul %4, %36, %cst_36 {dimension_numbers = #tpu.dot_dimension_numbers<[1], [0], [0], [1], [0, 0, 1, 1], [], []>} : vector<128x32xbf16>, vector<32x128xbf16>, vector<128x128xf32> -> vector<128x128xf32>
    %38 = arith.truncf %37 : vector<128x128xf32> to vector<128x128xbf16>
    %c768 = arith.constant 768 : index
    %c0_37 = arith.constant 0 : index
    %39 = vector.load %arg9[%c768, %c0_37] : memref<1024x128xbf16, #tpu.memory_space<vmem>>, vector<128x128xbf16>
    tpu.vector_store %arg9[%c768, %c0_37], %38 {strides = array<i32>} : memref<1024x128xbf16, #tpu.memory_space<vmem>>, vector<128x128xbf16>,
    %c0_38 = arith.constant 0 : index
    %c7 = arith.constant 7 : index
    %c0_39 = arith.constant 0 : index
    %c0_40 = arith.constant 0 : index
    %40 = vector.load %arg4[%c0_38, %c7, %c0_39, %c0_40] : memref<1x8x32x128xbf16, #tpu.memory_space<vmem>>, vector<1x1x32x128xbf16>
    %41 = vector.shape_cast %40 : vector<1x1x32x128xbf16> to vector<32x128xbf16>
    %cst_41 = arith.constant dense<0.000000e+00> : vector<128x128xf32>
    %42 = tpu.matmul %4, %41, %cst_41 {dimension_numbers = #tpu.dot_dimension_numbers<[1], [0], [0], [1], [0, 0, 1, 1], [], []>} : vector<128x32xbf16>, vector<32x128xbf16>, vector<128x128xf32> -> vector<128x128xf32>
    %43 = arith.truncf %42 : vector<128x128xf32> to vector<128x128xbf16>
    %c896 = arith.constant 896 : index
    %c0_42 = arith.constant 0 : index
    %44 = vector.load %arg9[%c896, %c0_42] : memref<1024x128xbf16, #tpu.memory_space<vmem>>, vector<128x128xbf16>
    tpu.vector_store %arg9[%c896, %c0_42], %43 {strides = array<i32>} : memref<1024x128xbf16, #tpu.memory_space<vmem>>, vector<128x128xbf16>,
    %c0_43 = arith.constant 0 : index
    %c0_44 = arith.constant 0 : index
    %c0_45 = arith.constant 0 : index
    %45 = vector.load %arg2[%c0_43, %c0_44, %c0_45] : memref<1x128x1024xbf16, #tpu.memory_space<vmem>>, vector<1x128x1024xbf16>
    %46 = vector.shape_cast %45 : vector<1x128x1024xbf16> to vector<128x1024xbf16>
    %c0_46 = arith.constant 0 : index
    %c0_47 = arith.constant 0 : index
    %47 = vector.load %arg9[%c0_46, %c0_47] : memref<1024x128xbf16, #tpu.memory_space<vmem>>, vector<1024x128xbf16>
    %cst_48 = arith.constant dense<0.000000e+00> : vector<128x128xf32>
    %48 = tpu.matmul %46, %47, %cst_48 {dimension_numbers = #tpu.dot_dimension_numbers<[1], [0], [0], [1], [0, 0, 1, 1], [], []>} : vector<128x1024xbf16>, vector<1024x128xbf16>, vector<128x128xf32> -> vector<128x128xf32>
    %c0_49 = arith.constant 0 : index
    %c0_50 = arith.constant 0 : index
    %c0_51 = arith.constant 0 : index
    %49 = vector.load %arg5[%c0_49, %c0_50, %c0_51] : memref<1x32x128xbf16, #tpu.memory_space<vmem>>, vector<1x32x128xbf16>
    %50 = vector.shape_cast %49 : vector<1x32x128xbf16> to vector<32x128xbf16>
    %cst_52 = arith.constant dense<0.000000e+00> : vector<128x128xf32>
    %51 = tpu.matmul %4, %50, %cst_52 {dimension_numbers = #tpu.dot_dimension_numbers<[1], [0], [0], [1], [0, 0, 1, 1], [], []>} : vector<128x32xbf16>, vector<32x128xbf16>, vector<128x128xf32> -> vector<128x128xf32>
    %52 = arith.addf %48, %51 : vector<128x128xf32>
    %c0_53 = arith.constant 0 : index
    %c0_54 = arith.constant 0 : index
    %c0_55 = arith.constant 0 : index
    %53 = vector.load %arg6[%c0_53, %c0_54, %c0_55] : memref<1x1x128xf32, #tpu.memory_space<vmem>>, vector<1x1x128xf32>
    %54 = vector.shape_cast %53 : vector<1x1x128xf32> to vector<1x128xf32>
    %55 = vector.broadcast %54 : vector<1x128xf32> to vector<128x128xf32>
    %56 = arith.addf %52, %55 : vector<128x128xf32>
    %c3_i32 = arith.constant 3 : i32
    %57 = arith.cmpi slt, %arg1, %c3_i32 : i32
    %58 = arith.extui %57 : i1 to i32
    %c0_i32_56 = arith.constant 0 : i32
    %59 = arith.cmpi ne, %58, %c0_i32_56 : i32
    scf.if %59 {
      %63 = vector.extract_strided_slice %56 {offsets = [0, 0], sizes = [128, 32], strides = [1, 1]} : vector<128x128xf32> to vector<128x32xf32>
      %c0_59 = arith.constant 0 : index
      %c0_60 = arith.constant 0 : index
      %64 = vector.load %arg8[%c0_59, %c0_60] : memref<128x32xf32, #tpu.memory_space<vmem>>, vector<128x32xf32>
      tpu.vector_store %arg8[%c0_59, %c0_60], %63 {strides = array<i32>} : memref<128x32xf32, #tpu.memory_space<vmem>>, vector<128x32xf32>,
    } else {
    }
    %c3_i32_57 = arith.constant 3 : i32
    %60 = arith.cmpi eq, %arg1, %c3_i32_57 : i32
    %61 = arith.extui %60 : i1 to i32
    %c0_i32_58 = arith.constant 0 : i32
    %62 = arith.cmpi ne, %61, %c0_i32_58 : i32
    scf.if %62 {
      %cst_59 = arith.constant 0.000000e+00 : f32
      %63 = vector.broadcast %cst_59 : f32 to vector<128x128xf32>
      %64 = arith.maximumf %56, %63 : vector<128x128xf32>
      %c0_60 = arith.constant 0 : index
      %c0_61 = arith.constant 0 : index
      %c0_62 = arith.constant 0 : index
      %65 = vector.load %arg7[%c0_60, %c0_61, %c0_62] : memref<1x128x128xf32, #tpu.memory_space<vmem>>, vector<1x128x128xf32>
      %66 = vector.shape_cast %65 : vector<1x128x128xf32> to vector<128x128xf32>
      %67 = vector.shape_cast %64 : vector<128x128xf32> to vector<1x128x128xf32>
      tpu.vector_store %arg7[%c0_60, %c0_61, %c0_62], %67 {strides = array<i32>} : memref<1x128x128xf32, #tpu.memory_space<vmem>>, vector<1x128x128xf32>,
    } else {
    }
    return
  }
  func.func @transform_0(%arg0: i32, %arg1: i32) -> (i32, i32, i32) {
    %c0_i32 = arith.constant 0 : i32
    %c0_i32_0 = arith.constant 0 : i32
    %c0_i32_1 = arith.constant 0 : i32
    return %arg0, %c0_i32, %c0_i32_0 : i32, i32, i32
  }
  func.func @transform_1(%arg0: i32, %arg1: i32) -> (i32, i32, i32) {
    %c0_i32 = arith.constant 0 : i32
    %c0_i32_0 = arith.constant 0 : i32
    %c0_i32_1 = arith.constant 0 : i32
    return %arg0, %c0_i32, %c0_i32_0 : i32, i32, i32
  }
  func.func @transform_2(%arg0: i32, %arg1: i32) -> (i32, i32, i32, i32) {
    %c0_i32 = arith.constant 0 : i32
    %c0_i32_0 = arith.constant 0 : i32
    %c0_i32_1 = arith.constant 0 : i32
    %c0_i32_2 = arith.constant 0 : i32
    return %arg1, %c0_i32, %c0_i32_0, %c0_i32_1 : i32, i32, i32, i32
  }
  func.func @transform_3(%arg0: i32, %arg1: i32) -> (i32, i32, i32) {
    %c0_i32 = arith.constant 0 : i32
    %c0_i32_0 = arith.constant 0 : i32
    %c0_i32_1 = arith.constant 0 : i32
    return %arg1, %c0_i32, %c0_i32_0 : i32, i32, i32
  }
  func.func @transform_4(%arg0: i32, %arg1: i32) -> (i32, i32, i32) {
    %c0_i32 = arith.constant 0 : i32
    %c0_i32_0 = arith.constant 0 : i32
    %c0_i32_1 = arith.constant 0 : i32
    return %arg1, %c0_i32, %c0_i32_0 : i32, i32, i32
  }
  func.func @transform_5(%arg0: i32, %arg1: i32) -> (i32, i32, i32) {
    %c0_i32 = arith.constant 0 : i32
    %c0_i32_0 = arith.constant 0 : i32
    %c0_i32_1 = arith.constant 0 : i32
    return %arg0, %c0_i32, %c0_i32_0 : i32, i32, i32
  }
}

</mosaic_0001>

<llo_original>
// kernel: tpu_custom_call.1
$region0: #{tpu_custom_call.1}
  #allocation0 [shape = 'u32[]', space=smem, size = 0x4, offset = 0x4, fixed_abs, tag = 'smem constant byte address 0x4 - core index']
  #allocation1 [shape = 'u32[144,128]{1,0:T(1,128)}', space=vmem, size = 0x12000, scoped, tag = 'internal scratch']
  #allocation2 [shape = 'f32[128,32]{1,0:T(8,128)}', space=vmem, size = 0x10000, scoped, tag = 'scratch operand']
  #allocation3 [shape = 'bf16[1024,128]{1,0:T(16,128)(2,1)}', space=vmem, size = 0x40000, scoped, tag = 'scratch operand']
  %s0 = inlined_call_operand.hbm [shape: bf16[2,128,1024], index: 0, kind: input, shape index: {}]
  %s1 = inlined_call_operand.vmem [shape: f32[2,128,32], index: 1, kind: input, shape index: {}]
  %s2 = inlined_call_operand.hbm [shape: bf16[4,8,32,128], index: 2, kind: input, shape index: {}]
  %s3 = inlined_call_operand.vmem [shape: bf16[4,32,128], index: 3, kind: input, shape index: {}]
  %s4 = inlined_call_operand.vmem [shape: f32[4,1,128], index: 4, kind: input, shape index: {}]
  %s5 = inlined_call_operand.hbm [shape: f32[2,128,128], index: 5, kind: output, shape index: {}]
  %s6 = sld [smem:[#allocation0]]
  $region73: #{tpu_custom_call.1} parent=0
    _
  %s8 = ssub.s32 1, %s6
  %s9 = scalar_select 0, %s8, %s6
  $region1: #{tpu_custom_call.1} parent=0
    #allocation4 [shape = 'u8[524288]{0}', space=vmem, size = 0x80000, scoped, tag = 'input window, operand 0']
    #allocation5 [shape = 's32[2]{0}', space=sflag, size = 0x8, scoped, tag = 'scoped memory for tpu_custom_call.1']
    #allocation6 [shape = 's32[2]{0}', space=sflag, size = 0x8, scoped, tag = 'scoped memory for tpu_custom_call.1']
    #allocation7 [shape = 'u8[131072]{0}', space=vmem, size = 0x20000, scoped, tag = 'input window, operand 2']
    #allocation8 [shape = 's32[2]{0}', space=sflag, size = 0x8, scoped, tag = 'scoped memory for tpu_custom_call.1']
    #allocation9 [shape = 'u8[131072]{0}', space=vmem, size = 0x20000, scoped, tag = 'output window, operand 0']
    %10 = vsyncpa [#allocation5], 0
    %s11 = scalar_lea.sflag [#allocation5], 1
    %12 = vsyncpa %s11, 0
    %13 = vsyncpa [#allocation8], 0
    %s14 = scalar_lea.sflag [#allocation8], 1
    %15 = vsyncpa %s14, 0
    %16 = vsyncpa [#allocation6], 0
    %s17 = scalar_lea.sflag [#allocation6], 1
    %18 = vsyncpa %s17, 0
    loop: start=0, step=1, limit=10
    $region2: #{tpu_custom_call.1} parent=1 // loop_pre_header
      _
    $region3: #{tpu_custom_call.1} parent=1 // loop_header
      %s20 = sphi 0, %s24
      %p21 = scmp.ge.s32.totalorder %s20, 10
      %s27 = sphi 0, %s39
      %s28 = sphi 0, %s35
      %s29 = sphi 0, %s27
      %s30 = sphi 0, %s28
      %s31 = sphi 0, %s29
      %s32 = sphi 0, %s30
      %s42 = sphi 0, %s44
      %s45 = sphi 0, %s42
      %s46 = sphi 0, %s45
      %s62 = sphi 0, %s46
      %s68 = sphi 0, %s70
      %s71 = sphi 0, %s68
      %s72 = sphi 0, %s71
      %s88 = sphi 0, %s72
      %s94 = sphi 0, %s96
      %s97 = sphi 0, %s94
      %s98 = sphi 0, %s97
      %s114 = sphi 0, %s98
      %s120 = sphi 0, %s122
      %s123 = sphi 0, %s120
      %s124 = sphi 0, %s123
      %s140 = sphi 0, %s124
      %s146 = sphi 0, %s148
      %s149 = sphi 0, %s146
      %s150 = sphi 0, %s149
      %s166 = sphi 0, %s150
      %s172 = sphi 0, %s174
      %s175 = sphi 0, %s172
      %s176 = sphi 0, %s175
      %s192 = sphi 0, %s176
    $region4: #{tpu_custom_call.1} parent=1 // loop_header_branch
      %23 = sbr.rel (%p21) target = $region8
    $region5: #{tpu_custom_call.1} parent=1 // loop_body
      %s25 = ssub.s32 %s20, 1
      %s26 = ssub.s32 %s20, 2
      %s33 = sadd.s32 1, %s28
      %p34 = scmp.ge.s32.totalorder %s33, 4
      %s35 = scalar_select %p34, 0, %s33
      %s36 = sadd.s32 1, %s27
      %s37 = scalar_select %p34, %s36, %s27
      %p38 = scmp.ge.s32.totalorder %s37, 2
      %s39 = scalar_select %p38, 0, %s37
      %s40 = ssub.s32 %s27, %s39
      %p41 = scmp.eq.s32.totalorder %s40, 0
      %s43 = sadd.s32 %s42, 1
      %s44 = scalar_select %p41, %s42, %s43
      %p47 = pneg %p41
      %p48 = scmp.eq.s32.totalorder %s20, 7
      %p49 = por %p47, %p48
      %p50 = scmp.ne.s32.totalorder %s42, %s45
      %p51 = scmp.eq.s32.totalorder %s20, 0
      %p52 = por %p50, %p51
      %p53 = scmp.ne.s32.totalorder %s42, %s45
      %p54 = scmp.eq.s32.totalorder %s25, 7
      %p55 = por %p53, %p54
      %p56 = scmp.ne.s32.totalorder %s45, %s46
      %p57 = scmp.eq.s32.totalorder %s25, 0
      %p58 = por %p56, %p57
      %p59 = scmp.ne.s32.totalorder %s45, %s46
      %p60 = scmp.eq.s32.totalorder %s26, 7
      %p61 = por %p59, %p60
      %p63 = scmp.ne.s32.totalorder %s46, %s62
      %p64 = scmp.eq.s32.totalorder %s26, 0
      %p65 = por %p63, %p64
      %s66 = ssub.s32 %s27, %s39
      %p67 = scmp.eq.s32.totalorder %s66, 0
      %s69 = sadd.s32 %s68, 1
      %s70 = scalar_select %p67, %s68, %s69
      %p73 = pneg %p67
      %p74 = scmp.eq.s32.totalorder %s20, 7
      %p75 = por %p73, %p74
      %p76 = scmp.ne.s32.totalorder %s68, %s71
      %p77 = scmp.eq.s32.totalorder %s20, 0
      %p78 = por %p76, %p77
      %p79 = scmp.ne.s32.totalorder %s68, %s71
      %p80 = scmp.eq.s32.totalorder %s25, 7
      %p81 = por %p79, %p80
      %p82 = scmp.ne.s32.totalorder %s71, %s72
      %p83 = scmp.eq.s32.totalorder %s25, 0
      %p84 = por %p82, %p83
      %p85 = scmp.ne.s32.totalorder %s71, %s72
      %p86 = scmp.eq.s32.totalorder %s26, 7
      %p87 = por %p85, %p86
      %p89 = scmp.ne.s32.totalorder %s72, %s88
      %p90 = scmp.eq.s32.totalorder %s26, 0
      %p91 = por %p89, %p90
      %s92 = ssub.s32 %s28, %s35
      %p93 = scmp.eq.s32.totalorder %s92, 0
      %s95 = sadd.s32 %s94, 1
      %s96 = scalar_select %p93, %s94, %s95
      %p99 = pneg %p93
      %p100 = scmp.eq.s32.totalorder %s20, 7
      %p101 = por %p99, %p100
      %p102 = scmp.ne.s32.totalorder %s94, %s97
      %p103 = scmp.eq.s32.totalorder %s20, 0
      %p104 = por %p102, %p103
      %p105 = scmp.ne.s32.totalorder %s94, %s97
      %p106 = scmp.eq.s32.totalorder %s25, 7
      %p107 = por %p105, %p106
      %p108 = scmp.ne.s32.totalorder %s97, %s98
      %p109 = scmp.eq.s32.totalorder %s25, 0
      %p110 = por %p108, %p109
      %p111 = scmp.ne.s32.totalorder %s97, %s98
      %p112 = scmp.eq.s32.totalorder %s26, 7
      %p113 = por %p111, %p112
      %p115 = scmp.ne.s32.totalorder %s98, %s114
      %p116 = scmp.eq.s32.totalorder %s26, 0
      %p117 = por %p115, %p116
      %s118 = ssub.s32 %s28, %s35
      %p119 = scmp.eq.s32.totalorder %s118, 0
      %s121 = sadd.s32 %s120, 1
      %s122 = scalar_select %p119, %s120, %s121
      %p125 = pneg %p119
      %p126 = scmp.eq.s32.totalorder %s20, 7
      %p127 = por %p125, %p126
      %p128 = scmp.ne.s32.totalorder %s120, %s123
      %p129 = scmp.eq.s32.totalorder %s20, 0
      %p130 = por %p128, %p129
      %p131 = scmp.ne.s32.totalorder %s120, %s123
      %p132 = scmp.eq.s32.totalorder %s25, 7
      %p133 = por %p131, %p132
      %p134 = scmp.ne.s32.totalorder %s123, %s124
      %p135 = scmp.eq.s32.totalorder %s25, 0
      %p136 = por %p134, %p135
      %p137 = scmp.ne.s32.totalorder %s123, %s124
      %p138 = scmp.eq.s32.totalorder %s26, 7
      %p139 = por %p137, %p138
      %p141 = scmp.ne.s32.totalorder %s124, %s140
      %p142 = scmp.eq.s32.totalorder %s26, 0
      %p143 = por %p141, %p142
      %s144 = ssub.s32 %s28, %s35
      %p145 = scmp.eq.s32.totalorder %s144, 0
      %s147 = sadd.s32 %s146, 1
      %s148 = scalar_select %p145, %s146, %s147
      %p151 = pneg %p145
      %p152 = scmp.eq.s32.totalorder %s20, 7
      %p153 = por %p151, %p152
      %p154 = scmp.ne.s32.totalorder %s146, %s149
      %p155 = scmp.eq.s32.totalorder %s20, 0
      %p156 = por %p154, %p155
      %p157 = scmp.ne.s32.totalorder %s146, %s149
      %p158 = scmp.eq.s32.totalorder %s25, 7
      %p159 = por %p157, %p158
      %p160 = scmp.ne.s32.totalorder %s149, %s150
      %p161 = scmp.eq.s32.totalorder %s25, 0
      %p162 = por %p160, %p161
      %p163 = scmp.ne.s32.totalorder %s149, %s150
      %p164 = scmp.eq.s32.totalorder %s26, 7
      %p165 = por %p163, %p164
      %p167 = scmp.ne.s32.totalorder %s150, %s166
      %p168 = scmp.eq.s32.totalorder %s26, 0
      %p169 = por %p167, %p168
      %s170 = ssub.s32 %s27, %s39
      %p171 = scmp.eq.s32.totalorder %s170, 0
      %s173 = sadd.s32 %s172, 1
      %s174 = scalar_select %p171, %s172, %s173
      %p177 = pneg %p171
      %p178 = scmp.eq.s32.totalorder %s20, 7
      %p179 = por %p177, %p178
      %p180 = scmp.ne.s32.totalorder %s172, %s175
      %p181 = scmp.eq.s32.totalorder %s20, 0
      %p182 = por %p180, %p181
      %p183 = scmp.ne.s32.totalorder %s172, %s175
      %p184 = scmp.eq.s32.totalorder %s25, 7
      %p185 = por %p183, %p184
      %p186 = scmp.ne.s32.totalorder %s175, %s176
      %p187 = scmp.eq.s32.totalorder %s25, 0
      %p188 = por %p186, %p187
      %p189 = scmp.ne.s32.totalorder %s175, %s176
      %p190 = scmp.eq.s32.totalorder %s26, 7
      %p191 = por %p189, %p190
      %p193 = scmp.ne.s32.totalorder %s176, %s192
      %p194 = scmp.eq.s32.totalorder %s26, 0
      %p195 = por %p193, %p194
      %p196 = scmp.le.s32.totalorder 1, %s20
      %p197 = scmp.lt.s32.totalorder %s20, 9
      %p198 = pnand %p196, %p197
      %p199 = pneg %p198
      // Predicated region
      $region9: #{tpu_custom_call.1} parent=5 // pred_check
        _
      $region10: #{tpu_custom_call.1} parent=5 // pred_check_branch
        %201 = sbr.rel (%p198) target = $region12
      $region11: #{tpu_custom_call.1} parent=5 // pred_region
        %s202 = ssub.s32 %s20, 1
      $region12: #{tpu_custom_call.1} parent=5 // pred_fallthru
        _
      %p203 = scmp.lt.s32.totalorder %s20, 8
      // Predicated region
      $region13: #{tpu_custom_call.1} parent=5 // pred_check
        %p204 = pneg %p203
      $region14: #{tpu_custom_call.1} parent=5 // pred_check_branch
        %206 = sbr.rel (%p204) target = $region16
      $region15: #{tpu_custom_call.1} parent=5 // pred_region
        // Predicated region
        $region17: #{tpu_custom_call.1} parent=15 // pred_check
          %p207 = pneg %p52
        $region18: #{tpu_custom_call.1} parent=15 // pred_check_branch
          %209 = sbr.rel (%p207) target = $region20
        $region19: #{tpu_custom_call.1} parent=15 // pred_region
          %s210 = sand.u32 %s42, 1
          %s211 = scalar_lea.sflag [#allocation5], %s210
          %s212 = sand.u32 %s42, 1
          %s213 = smul.addr %s212, 512
          %s214 = scalar_lea.vmem [#allocation4], %s213
          %s216 = ssub.s32 8192, 8192
          %217 = vsyncadd %s211, %s216
          %s218 = smul.addr %s27, 128
          %s219 = smul.addr %s218, 64
          %s220 = scalar_lea.hbm %s0, %s219
          %s221 = sshll.u32 %s214, 4
          %s222 = int_to_ptr.vmem [resolvable:$true] %s221
          %227 = dma.hbm_to_vmem [thread:$0]  %s220, 8192, %s222, %s211, 512, 512, 32
        $region20: #{tpu_custom_call.1} parent=15 // pred_fallthru
          _
        // Predicated region
        $region21: #{tpu_custom_call.1} parent=15 // pred_check
          %p228 = pneg %p78
        $region22: #{tpu_custom_call.1} parent=15 // pred_check_branch
          %230 = sbr.rel (%p228) target = $region24
        $region23: #{tpu_custom_call.1} parent=15 // pred_region
          %p231 = scmp.lt.s32.totalorder %s27, 1
          %s232 = scalar_select %p231, %s27, 1
          %s233 = smul.addr %s232, 16
          %s234 = smul.addr %s233, 8
          %s235 = scalar_lea.vmem %s1, %s234
        $region24: #{tpu_custom_call.1} parent=15 // pred_fallthru
          _
        // Predicated region
        $region25: #{tpu_custom_call.1} parent=15 // pred_check
          %p236 = pneg %p104
        $region26: #{tpu_custom_call.1} parent=15 // pred_check_branch
          %238 = sbr.rel (%p236) target = $region28
        $region27: #{tpu_custom_call.1} parent=15 // pred_region
          %s239 = sand.u32 %s94, 1
          %s240 = scalar_lea.sflag [#allocation8], %s239
          %s241 = sand.u32 %s94, 1
          %s242 = smul.addr %s241, 128
          %s243 = scalar_lea.vmem [#allocation7], %s242
          %s245 = ssub.s32 2048, 2048
          %246 = vsyncadd %s240, %s245
          %s247 = smul.addr %s28, 32
          %s248 = smul.addr %s247, 64
          %s249 = scalar_lea.hbm %s2, %s248
          %s250 = sshll.u32 %s243, 4
          %s251 = int_to_ptr.vmem [resolvable:$true] %s250
          %256 = dma.hbm_to_vmem [thread:$0]  %s249, 2048, %s251, %s240, 64, 64, 4
        $region28: #{tpu_custom_call.1} parent=15 // pred_fallthru
          _
        // Predicated region
        $region29: #{tpu_custom_call.1} parent=15 // pred_check
          %p257 = pneg %p130
        $region30: #{tpu_custom_call.1} parent=15 // pred_check_branch
          %259 = sbr.rel (%p257) target = $region32
        $region31: #{tpu_custom_call.1} parent=15 // pred_region
          %p260 = scmp.lt.s32.totalorder %s28, 3
          %s261 = scalar_select %p260, %s28, 3
          %s262 = smul.addr %s261, 4
          %s263 = smul.addr %s262, 4
          %s264 = scalar_lea.vmem %s3, %s263
        $region32: #{tpu_custom_call.1} parent=15 // pred_fallthru
          _
        // Predicated region
        $region33: #{tpu_custom_call.1} parent=15 // pred_check
          %p265 = pneg %p156
        $region34: #{tpu_custom_call.1} parent=15 // pred_check_branch
          %267 = sbr.rel (%p265) target = $region36
        $region35: #{tpu_custom_call.1} parent=15 // pred_region
          %p268 = scmp.lt.s32.totalorder %s28, 3
          %s269 = scalar_select %p268, %s28, 3
          %s270 = scalar_lea.vmem %s4, %s269
        $region36: #{tpu_custom_call.1} parent=15 // pred_fallthru
          _
      $region16: #{tpu_custom_call.1} parent=5 // pred_fallthru
        _
      %p271 = scmp.le.s32.totalorder 1, %s20
      %p272 = scmp.lt.s32.totalorder %s20, 9
      %p273 = pnand %p271, %p272
      %p274 = pneg %p273
      // Predicated region
      $region37: #{tpu_custom_call.1} parent=5 // pred_check
        _
      $region38: #{tpu_custom_call.1} parent=5 // pred_check_branch
        %276 = sbr.rel (%p273) target = $region40
      $region39: #{tpu_custom_call.1} parent=5 // pred_region
        %s277 = ssub.s32 %s20, 1
        %s278 = sand.u32 %s45, 1
        %s279 = scalar_lea.sflag [#allocation5], %s278
        %s280 = sand.u32 %s45, 1
        %s281 = smul.addr %s280, 512
        %s282 = scalar_lea.vmem [#allocation4], %s281
        // Predicated region
        $region41: #{tpu_custom_call.1} parent=39 // pred_check
          %p283 = pneg %p58
        $region42: #{tpu_custom_call.1} parent=39 // pred_check_branch
          %285 = sbr.rel (%p283) target = $region44
        $region43: #{tpu_custom_call.1} parent=39 // pred_region
          %286 = dma.done %s279, 8192
        $region44: #{tpu_custom_call.1} parent=39 // pred_fallthru
          _
        %s287 = sand.u32 %s97, 1
        %s288 = scalar_lea.sflag [#allocation8], %s287
        %s289 = sand.u32 %s97, 1
        %s290 = smul.addr %s289, 128
        %s291 = scalar_lea.vmem [#allocation7], %s290
        // Predicated region
        $region45: #{tpu_custom_call.1} parent=39 // pred_check
          %p292 = pneg %p110
        $region46: #{tpu_custom_call.1} parent=39 // pred_check_branch
          %294 = sbr.rel (%p292) target = $region48
        $region47: #{tpu_custom_call.1} parent=39 // pred_region
          %295 = dma.done %s288, 2048
        $region48: #{tpu_custom_call.1} parent=39 // pred_fallthru
          _
        %s296 = sand.u32 %s45, 1
        %s297 = scalar_lea.sflag [#allocation5], %s296
        %s298 = sand.u32 %s45, 1
        %s299 = smul.addr %s298, 512
        %s300 = scalar_lea.vmem [#allocation4], %s299
        %p301 = pneg %p58
        %p302 = pneg %p55
        %p303 = scmp.lt.s32.totalorder %s29, 1
        %s304 = scalar_select %p303, %s29, 1
        %s305 = smul.addr %s304, 16
        %s306 = smul.addr %s305, 8
        %s307 = scalar_lea.vmem %s1, %s306
        %p308 = pneg %p84
        %p309 = pneg %p81
        %s310 = sand.u32 %s97, 1
        %s311 = scalar_lea.sflag [#allocation8], %s310
        %s312 = sand.u32 %s97, 1
        %s313 = smul.addr %s312, 128
        %s314 = scalar_lea.vmem [#allocation7], %s313
        %p315 = pneg %p110
        %p316 = pneg %p107
        %p317 = scmp.lt.s32.totalorder %s30, 3
        %s318 = scalar_select %p317, %s30, 3
        %s319 = smul.addr %s318, 4
        %s320 = smul.addr %s319, 4
        %s321 = scalar_lea.vmem %s3, %s320
        %p322 = pneg %p136
        %p323 = pneg %p133
        %p324 = scmp.lt.s32.totalorder %s30, 3
        %s325 = scalar_select %p324, %s30, 3
        %s326 = scalar_lea.vmem %s4, %s325
        %p327 = pneg %p162
        %p328 = pneg %p159
        %p329 = pneg %p188
        %p330 = pneg %p185
        %s331 = sand.u32 %s175, 1
        %s332 = scalar_lea.sflag [#allocation6], %s331
        %s333 = sand.u32 %s175, 1
        %s334 = smul.addr %s333, 128
        %s335 = scalar_lea.vmem [#allocation9], %s334
        %p336 = scmp.lt.s32.totalorder %s29, 1
        %s337 = scalar_select %p336, %s29, 1
        %s338 = smul.addr %s337, 16
        %s339 = smul.addr %s338, 8
        %s340 = scalar_lea.vmem %s1, %s339
        %p341 = scmp.lt.s32.totalorder %s30, 3
        %s342 = scalar_select %p341, %s30, 3
        %s343 = smul.addr %s342, 4
        %s344 = smul.addr %s343, 4
        %s345 = scalar_lea.vmem %s3, %s344
        %p346 = scmp.lt.s32.totalorder %s30, 3
        %s347 = scalar_select %p346, %s30, 3
        %s348 = scalar_lea.vmem %s4, %s347
        %p350 = scmp.eq.s32.totalorder %s30, 0
        // Predicated region
        $region49: #{tpu_custom_call.1} parent=39 // pred_check
          %p351 = pneg %p350
        $region50: #{tpu_custom_call.1} parent=39 // pred_check_branch
          %353 = sbr.rel (%p351) target = $region52
        $region51: #{tpu_custom_call.1} parent=39 // pred_region
          %v354 = vld [vmem:[%s340] sm:$0xff]
          %v355 = vld [vmem:[%s340 + $0x8] sm:$0xff]
          %v356 = vld [vmem:[%s340 + $0x10] sm:$0xff]
          %v357 = vld [vmem:[%s340 + $0x18] sm:$0xff]
          %v358 = vld [vmem:[%s340 + $0x20] sm:$0xff]
          %v359 = vld [vmem:[%s340 + $0x28] sm:$0xff]
          %v360 = vld [vmem:[%s340 + $0x30] sm:$0xff]
          %v361 = vld [vmem:[%s340 + $0x38] sm:$0xff]
          %v362 = vld [vmem:[%s340 + $0x40] sm:$0xff]
          %v363 = vld [vmem:[%s340 + $0x48] sm:$0xff]
          %v364 = vld [vmem:[%s340 + $0x50] sm:$0xff]
          %v365 = vld [vmem:[%s340 + $0x58] sm:$0xff]
          %v366 = vld [vmem:[%s340 + $0x60] sm:$0xff]
          %v367 = vld [vmem:[%s340 + $0x68] sm:$0xff]
          %v368 = vld [vmem:[%s340 + $0x70] sm:$0xff]
          %v369 = vld [vmem:[%s340 + $0x78] sm:$0xff]
          %vm370 = vcmask 261120
          %371 = vst.msk [vmem:[#allocation2] sm:$0xff] %vm370, %v354
          %372 = vst.msk [vmem:[#allocation2 + $0x8] sm:$0xff] %vm370, %v355
          %373 = vst.msk [vmem:[#allocation2 + $0x10] sm:$0xff] %vm370, %v356
          %374 = vst.msk [vmem:[#allocation2 + $0x18] sm:$0xff] %vm370, %v357
          %375 = vst.msk [vmem:[#allocation2 + $0x20] sm:$0xff] %vm370, %v358
          %376 = vst.msk [vmem:[#allocation2 + $0x28] sm:$0xff] %vm370, %v359
          %377 = vst.msk [vmem:[#allocation2 + $0x30] sm:$0xff] %vm370, %v360
          %378 = vst.msk [vmem:[#allocation2 + $0x38] sm:$0xff] %vm370, %v361
          %379 = vst.msk [vmem:[#allocation2 + $0x40] sm:$0xff] %vm370, %v362
          %380 = vst.msk [vmem:[#allocation2 + $0x48] sm:$0xff] %vm370, %v363
          %381 = vst.msk [vmem:[#allocation2 + $0x50] sm:$0xff] %vm370, %v364
          %382 = vst.msk [vmem:[#allocation2 + $0x58] sm:$0xff] %vm370, %v365
          %383 = vst.msk [vmem:[#allocation2 + $0x60] sm:$0xff] %vm370, %v366
          %384 = vst.msk [vmem:[#allocation2 + $0x68] sm:$0xff] %vm370, %v367
          %385 = vst.msk [vmem:[#allocation2 + $0x70] sm:$0xff] %vm370, %v368
          %386 = vst.msk [vmem:[#allocation2 + $0x78] sm:$0xff] %vm370, %v369
        $region52: #{tpu_custom_call.1} parent=39 // pred_fallthru
          _
        %v387 = vld [vmem:[#allocation2] sm:$0xff]
        %v388 = vld [vmem:[#allocation2 + $0x8] sm:$0xff]
        %v389 = vld [vmem:[#allocation2 + $0x10] sm:$0xff]
        %v390 = vld [vmem:[#allocation2 + $0x18] sm:$0xff]
        %v391 = vld [vmem:[#allocation2 + $0x20] sm:$0xff]
        %v392 = vld [vmem:[#allocation2 + $0x28] sm:$0xff]
        %v393 = vld [vmem:[#allocation2 + $0x30] sm:$0xff]
        %v394 = vld [vmem:[#allocation2 + $0x38] sm:$0xff]
        %v395 = vld [vmem:[#allocation2 + $0x40] sm:$0xff]
        %v396 = vld [vmem:[#allocation2 + $0x48] sm:$0xff]
        %v397 = vld [vmem:[#allocation2 + $0x50] sm:$0xff]
        %v398 = vld [vmem:[#allocation2 + $0x58] sm:$0xff]
        %v399 = vld [vmem:[#allocation2 + $0x60] sm:$0xff]
        %v400 = vld [vmem:[#allocation2 + $0x68] sm:$0xff]
        %v401 = vld [vmem:[#allocation2 + $0x70] sm:$0xff]
        %v402 = vld [vmem:[#allocation2 + $0x78] sm:$0xff]
        %v403 = vpack.c.bf16 %v388, %v387
        %v404 = vpack.c.bf16 %v390, %v389
        %v405 = vpack.c.bf16 %v392, %v391
        %v406 = vpack.c.bf16 %v394, %v393
        %v407 = vpack.c.bf16 %v396, %v395
        %v408 = vpack.c.bf16 %v398, %v397
        %v409 = vpack.c.bf16 %v400, %v399
        %v410 = vpack.c.bf16 %v402, %v401
        %v411 = vld [vmem:[%s291] sm:$0xf]
        %v412 = vld [vmem:[%s291 + $0x4] sm:$0xf]
        %v413 = vld [vmem:[%s291 + $0x8] sm:$0xf]
        %v414 = vld [vmem:[%s291 + $0xc] sm:$0xf]
        %v419 = vunpack.c.l.b16 %v411
        %v420 = vunpack.c.l.b16 %v412
        %v421 = vunpack.c.l.b16 %v413
        %v422 = vunpack.c.l.b16 %v414
        %v423 = vpack.c.b16 %v420, %v419
        %v424 = vpack.c.b16 %v422, %v421
        %vm427 = vcmask 261120
        %v429 = vsel %vm427, %v403, 0
        %v432 = vsel %vm427, %v404, 0
        %v435 = vsel %vm427, %v405, 0
        %v438 = vsel %vm427, %v406, 0
        %v441 = vsel %vm427, %v407, 0
        %v444 = vsel %vm427, %v408, 0
        %v447 = vsel %vm427, %v409, 0
        %v450 = vsel %vm427, %v410, 0
        %452 = vmatprep.subr.bf16.mxu0 0
        %453 = vmatpush1.bf16.msra.mxu0 %v423
        %454 = vmatprep.subr.bf16.mxu0 0
        %455 = vmatpush1.bf16.msra.mxu0 %v424
        %456 = vmatprep.subr.bf16.mxu0 0
        %457 = vmatpush1.bf16.msra.mxu0 0
        %458 = vmatprep.subr.bf16.mxu0 0
        %459 = vmatpush1.bf16.msra.mxu0 0
        %460 = vmatprep.subr.bf16.mxu0 0
        %461 = vmatpush1.bf16.msra.mxu0 0
        %462 = vmatprep.subr.bf16.mxu0 0
        %463 = vmatpush1.bf16.msra.mxu0 0
        %464 = vmatprep.subr.bf16.mxu0 0
        %465 = vmatpush1.bf16.msra.mxu0 0
        %466 = vmatprep.subr.bf16.mxu0 0
        %467 = vmatpush1.bf16.msra.mxu0 0
        %468 = vmatprep.subr.bf16.mxu0 0
        %469 = vmatpush1.bf16.msra.mxu0 0
        %470 = vmatprep.subr.bf16.mxu0 0
        %471 = vmatpush1.bf16.msra.mxu0 0
        %472 = vmatprep.subr.bf16.mxu0 0
        %473 = vmatpush1.bf16.msra.mxu0 0
        %474 = vmatprep.subr.bf16.mxu0 0
        %475 = vmatpush1.bf16.msra.mxu0 0
        %476 = vmatprep.subr.bf16.mxu0 0
        %477 = vmatpush1.bf16.msra.mxu0 0
        %478 = vmatprep.subr.bf16.mxu0 0
        %479 = vmatpush1.bf16.msra.mxu0 0
        %480 = vmatprep.subr.bf16.mxu0 0
        %481 = vmatpush1.bf16.msra.mxu0 0
        %482 = vmatprep.subr.bf16.mxu0 0
        %483 = vmatpush1.bf16.msra.mxu0 0
        %484 = vmatprep.mubr.bf16.mxu0 0
        %485 = vmatmul.mubr.bf16.gmra.mrb[0].mxu0 %v429
        %v486 = vpop.f32.mrb[0].mxu0
        %v487 = vadd.f32 0.0, %v486
        %v488 = vpop.f32.mrb[0].mxu0
        %v489 = vpop.f32.mrb[0].mxu0
        %v490 = vadd.f32 0.0, %v489
        %v491 = vpop.f32.mrb[0].mxu0
        %492 = vmatprep.mubr.bf16.mxu0 0
        %493 = vmatmul.mubr.bf16.gmra.mrb[0].mxu0 %v432
        %v494 = vpop.f32.mrb[0].mxu0
        %v495 = vadd.f32 0.0, %v494
        %v496 = vpop.f32.mrb[0].mxu0
        %v497 = vpop.f32.mrb[0].mxu0
        %v498 = vadd.f32 0.0, %v497
        %v499 = vpop.f32.mrb[0].mxu0
        %500 = vmatprep.mubr.bf16.mxu0 0
        %501 = vmatmul.mubr.bf16.gmra.mrb[0].mxu0 %v435
        %v502 = vpop.f32.mrb[0].mxu0
        %v503 = vadd.f32 0.0, %v502
        %v504 = vpop.f32.mrb[0].mxu0
        %v505 = vpop.f32.mrb[0].mxu0
        %v506 = vadd.f32 0.0, %v505
        %v507 = vpop.f32.mrb[0].mxu0
        %508 = vmatprep.mubr.bf16.mxu0 0
        %509 = vmatmul.mubr.bf16.gmra.mrb[0].mxu0 %v438
        %v510 = vpop.f32.mrb[0].mxu0
        %v511 = vadd.f32 0.0, %v510
        %v512 = vpop.f32.mrb[0].mxu0
        %v513 = vpop.f32.mrb[0].mxu0
        %v514 = vadd.f32 0.0, %v513
        %v515 = vpop.f32.mrb[0].mxu0
        %516 = vmatprep.mubr.bf16.mxu0 0
        %517 = vmatmul.mubr.bf16.gmra.mrb[0].mxu0 %v441
        %v518 = vpop.f32.mrb[0].mxu0
        %v519 = vadd.f32 0.0, %v518
        %v520 = vpop.f32.mrb[0].mxu0
        %v521 = vpop.f32.mrb[0].mxu0
        %v522 = vadd.f32 0.0, %v521
        %v523 = vpop.f32.mrb[0].mxu0
        %524 = vmatprep.mubr.bf16.mxu0 0
        %525 = vmatmul.mubr.bf16.gmra.mrb[0].mxu0 %v444
        %v526 = vpop.f32.mrb[0].mxu0
        %v527 = vadd.f32 0.0, %v526
        %v528 = vpop.f32.mrb[0].mxu0
        %v529 = vpop.f32.mrb[0].mxu0
        %v530 = vadd.f32 0.0, %v529
        %v531 = vpop.f32.mrb[0].mxu0
        %532 = vmatprep.mubr.bf16.mxu0 0
        %533 = vmatmul.mubr.bf16.gmra.mrb[0].mxu0 %v447
        %v534 = vpop.f32.mrb[0].mxu0
        %v535 = vadd.f32 0.0, %v534
        %v536 = vpop.f32.mrb[0].mxu0
        %v537 = vpop.f32.mrb[0].mxu0
        %v538 = vadd.f32 0.0, %v537
        %v539 = vpop.f32.mrb[0].mxu0
        %540 = vmatprep.mubr.bf16.mxu0 0
        %541 = vmatmul.mubr.bf16.gmra.mrb[0].mxu0 %v450
        %v542 = vpop.f32.mrb[0].mxu0
        %v543 = vadd.f32 0.0, %v542
        %v544 = vpop.f32.mrb[0].mxu0
        %v545 = vpop.f32.mrb[0].mxu0
        %v546 = vadd.f32 0.0, %v545
        %v547 = vpop.f32.mrb[0].mxu0
        %548 = vdwg.mxu0
        %v549 = vpack.c.bf16 %v490, %v487
        %v550 = vpack.c.bf16 %v498, %v495
        %v551 = vpack.c.bf16 %v506, %v503
        %v552 = vpack.c.bf16 %v514, %v511
        %v553 = vpack.c.bf16 %v522, %v519
        %v554 = vpack.c.bf16 %v530, %v527
        %v555 = vpack.c.bf16 %v538, %v535
        %v556 = vpack.c.bf16 %v546, %v543
        %557 = vst [vmem:[#allocation3] sm:$0xff] %v549
        %558 = vst [vmem:[#allocation3 + $0x8] sm:$0xff] %v550
        %559 = vst [vmem:[#allocation3 + $0x10] sm:$0xff] %v551
        %560 = vst [vmem:[#allocation3 + $0x18] sm:$0xff] %v552
        %561 = vst [vmem:[#allocation3 + $0x20] sm:$0xff] %v553
        %562 = vst [vmem:[#allocation3 + $0x28] sm:$0xff] %v554
        %563 = vst [vmem:[#allocation3 + $0x30] sm:$0xff] %v555
        %564 = vst [vmem:[#allocation3 + $0x38] sm:$0xff] %v556
        %s565 = scalar_lea.vmem %s291, 16 [#allocation7]
        %v566 = vld [vmem:[%s565] sm:$0xf]
        %v567 = vld [vmem:[%s565 + $0x4] sm:$0xf]
        %v568 = vld [vmem:[%s565 + $0x8] sm:$0xf]
        %v569 = vld [vmem:[%s565 + $0xc] sm:$0xf]
        %v574 = vunpack.c.l.b16 %v566
        %v575 = vunpack.c.l.b16 %v567
        %v576 = vunpack.c.l.b16 %v568
        %v577 = vunpack.c.l.b16 %v569
        %v578 = vpack.c.b16 %v575, %v574
        %v579 = vpack.c.b16 %v577, %v576
        %582 = vmatprep.subr.bf16.mxu0 0
        %583 = vmatpush1.bf16.msra.mxu0 %v578
        %584 = vmatprep.subr.bf16.mxu0 0
        %585 = vmatpush1.bf16.msra.mxu0 %v579
        %586 = vmatprep.subr.bf16.mxu0 0
        %587 = vmatpush1.bf16.msra.mxu0 0
        %588 = vmatprep.subr.bf16.mxu0 0
        %589 = vmatpush1.bf16.msra.mxu0 0
        %590 = vmatprep.subr.bf16.mxu0 0
        %591 = vmatpush1.bf16.msra.mxu0 0
        %592 = vmatprep.subr.bf16.mxu0 0
        %593 = vmatpush1.bf16.msra.mxu0 0
        %594 = vmatprep.subr.bf16.mxu0 0
        %595 = vmatpush1.bf16.msra.mxu0 0
        %596 = vmatprep.subr.bf16.mxu0 0
        %597 = vmatpush1.bf16.msra.mxu0 0
        %598 = vmatprep.subr.bf16.mxu0 0
        %599 = vmatpush1.bf16.msra.mxu0 0
        %600 = vmatprep.subr.bf16.mxu0 0
        %601 = vmatpush1.bf16.msra.mxu0 0
        %602 = vmatprep.subr.bf16.mxu0 0
        %603 = vmatpush1.bf16.msra.mxu0 0
        %604 = vmatprep.subr.bf16.mxu0 0
        %605 = vmatpush1.bf16.msra.mxu0 0
        %606 = vmatprep.subr.bf16.mxu0 0
        %607 = vmatpush1.bf16.msra.mxu0 0
        %608 = vmatprep.subr.bf16.mxu0 0
        %609 = vmatpush1.bf16.msra.mxu0 0
        %610 = vmatprep.subr.bf16.mxu0 0
        %611 = vmatpush1.bf16.msra.mxu0 0
        %612 = vmatprep.subr.bf16.mxu0 0
        %613 = vmatpush1.bf16.msra.mxu0 0
        %614 = vmatprep.mubr.bf16.mxu0 0
        %615 = vmatmul.mubr.bf16.gmra.mrb[0].mxu0 %v429
        %v616 = vpop.f32.mrb[0].mxu0
        %v617 = vadd.f32 0.0, %v616
        %v618 = vpop.f32.mrb[0].mxu0
        %v619 = vpop.f32.mrb[0].mxu0
        %v620 = vadd.f32 0.0, %v619
        %v621 = vpop.f32.mrb[0].mxu0
        %622 = vmatprep.mubr.bf16.mxu0 0
        %623 = vmatmul.mubr.bf16.gmra.mrb[0].mxu0 %v432
        %v624 = vpop.f32.mrb[0].mxu0
        %v625 = vadd.f32 0.0, %v624
        %v626 = vpop.f32.mrb[0].mxu0
        %v627 = vpop.f32.mrb[0].mxu0
        %v628 = vadd.f32 0.0, %v627
        %v629 = vpop.f32.mrb[0].mxu0
        %630 = vmatprep.mubr.bf16.mxu0 0
        %631 = vmatmul.mubr.bf16.gmra.mrb[0].mxu0 %v435
        %v632 = vpop.f32.mrb[0].mxu0
        %v633 = vadd.f32 0.0, %v632
        %v634 = vpop.f32.mrb[0].mxu0
        %v635 = vpop.f32.mrb[0].mxu0
        %v636 = vadd.f32 0.0, %v635
        %v637 = vpop.f32.mrb[0].mxu0
        %638 = vmatprep.mubr.bf16.mxu0 0
        %639 = vmatmul.mubr.bf16.gmra.mrb[0].mxu0 %v438
        %v640 = vpop.f32.mrb[0].mxu0
        %v641 = vadd.f32 0.0, %v640
        %v642 = vpop.f32.mrb[0].mxu0
        %v643 = vpop.f32.mrb[0].mxu0
        %v644 = vadd.f32 0.0, %v643
        %v645 = vpop.f32.mrb[0].mxu0
        %646 = vmatprep.mubr.bf16.mxu0 0
        %647 = vmatmul.mubr.bf16.gmra.mrb[0].mxu0 %v441
        %v648 = vpop.f32.mrb[0].mxu0
        %v649 = vadd.f32 0.0, %v648
        %v650 = vpop.f32.mrb[0].mxu0
        %v651 = vpop.f32.mrb[0].mxu0
        %v652 = vadd.f32 0.0, %v651
        %v653 = vpop.f32.mrb[0].mxu0
        %654 = vmatprep.mubr.bf16.mxu0 0
        %655 = vmatmul.mubr.bf16.gmra.mrb[0].mxu0 %v444
        %v656 = vpop.f32.mrb[0].mxu0
        %v657 = vadd.f32 0.0, %v656
        %v658 = vpop.f32.mrb[0].mxu0
        %v659 = vpop.f32.mrb[0].mxu0
        %v660 = vadd.f32 0.0, %v659
        %v661 = vpop.f32.mrb[0].mxu0
        %662 = vmatprep.mubr.bf16.mxu0 0
        %663 = vmatmul.mubr.bf16.gmra.mrb[0].mxu0 %v447
        %v664 = vpop.f32.mrb[0].mxu0
        %v665 = vadd.f32 0.0, %v664
        %v666 = vpop.f32.mrb[0].mxu0
        %v667 = vpop.f32.mrb[0].mxu0
        %v668 = vadd.f32 0.0, %v667
        %v669 = vpop.f32.mrb[0].mxu0
        %670 = vmatprep.mubr.bf16.mxu0 0
        %671 = vmatmul.mubr.bf16.gmra.mrb[0].mxu0 %v450
        %v672 = vpop.f32.mrb[0].mxu0
        %v673 = vadd.f32 0.0, %v672
        %v674 = vpop.f32.mrb[0].mxu0
        %v675 = vpop.f32.mrb[0].mxu0
        %v676 = vadd.f32 0.0, %v675
        %v677 = vpop.f32.mrb[0].mxu0
        %678 = vdwg.mxu0
        %v679 = vpack.c.bf16 %v620, %v617
        %v680 = vpack.c.bf16 %v628, %v625
        %v681 = vpack.c.bf16 %v636, %v633
        %v682 = vpack.c.bf16 %v644, %v641
        %v683 = vpack.c.bf16 %v652, %v649
        %v684 = vpack.c.bf16 %v660, %v657
        %v685 = vpack.c.bf16 %v668, %v665
        %v686 = vpack.c.bf16 %v676, %v673
        %687 = vst [vmem:[#allocation3 + $0x40] sm:$0xff] %v679
        %688 = vst [vmem:[#allocation3 + $0x48] sm:$0xff] %v680
        %689 = vst [vmem:[#allocation3 + $0x50] sm:$0xff] %v681
        %690 = vst [vmem:[#allocation3 + $0x58] sm:$0xff] %v682
        %691 = vst [vmem:[#allocation3 + $0x60] sm:$0xff] %v683
        %692 = vst [vmem:[#allocation3 + $0x68] sm:$0xff] %v684
        %693 = vst [vmem:[#allocation3 + $0x70] sm:$0xff] %v685
        %694 = vst [vmem:[#allocation3 + $0x78] sm:$0xff] %v686
        %s695 = scalar_lea.vmem %s291, 32 [#allocation7]
        %v696 = vld [vmem:[%s695] sm:$0xf]
        %v697 = vld [vmem:[%s695 + $0x4] sm:$0xf]
        %v698 = vld [vmem:[%s695 + $0x8] sm:$0xf]
        %v699 = vld [vmem:[%s695 + $0xc] sm:$0xf]
        %v704 = vunpack.c.l.b16 %v696
        %v705 = vunpack.c.l.b16 %v697
        %v706 = vunpack.c.l.b16 %v698
        %v707 = vunpack.c.l.b16 %v699
        %v708 = vpack.c.b16 %v705, %v704
        %v709 = vpack.c.b16 %v707, %v706
        %712 = vmatprep.subr.bf16.mxu0 0
        %713 = vmatpush1.bf16.msra.mxu0 %v708
        %714 = vmatprep.subr.bf16.mxu0 0
        %715 = vmatpush1.bf16.msra.mxu0 %v709
        %716 = vmatprep.subr.bf16.mxu0 0
        %717 = vmatpush1.bf16.msra.mxu0 0
        %718 = vmatprep.subr.bf16.mxu0 0
        %719 = vmatpush1.bf16.msra.mxu0 0
        %720 = vmatprep.subr.bf16.mxu0 0
        %721 = vmatpush1.bf16.msra.mxu0 0
        %722 = vmatprep.subr.bf16.mxu0 0
        %723 = vmatpush1.bf16.msra.mxu0 0
        %724 = vmatprep.subr.bf16.mxu0 0
        %725 = vmatpush1.bf16.msra.mxu0 0
        %726 = vmatprep.subr.bf16.mxu0 0
        %727 = vmatpush1.bf16.msra.mxu0 0
        %728 = vmatprep.subr.bf16.mxu0 0
        %729 = vmatpush1.bf16.msra.mxu0 0
        %730 = vmatprep.subr.bf16.mxu0 0
        %731 = vmatpush1.bf16.msra.mxu0 0
        %732 = vmatprep.subr.bf16.mxu0 0
        %733 = vmatpush1.bf16.msra.mxu0 0
        %734 = vmatprep.subr.bf16.mxu0 0
        %735 = vmatpush1.bf16.msra.mxu0 0
        %736 = vmatprep.subr.bf16.mxu0 0
        %737 = vmatpush1.bf16.msra.mxu0 0
        %738 = vmatprep.subr.bf16.mxu0 0
        %739 = vmatpush1.bf16.msra.mxu0 0
        %740 = vmatprep.subr.bf16.mxu0 0
        %741 = vmatpush1.bf16.msra.mxu0 0
        %742 = vmatprep.subr.bf16.mxu0 0
        %743 = vmatpush1.bf16.msra.mxu0 0
        %744 = vmatprep.mubr.bf16.mxu0 0
        %745 = vmatmul.mubr.bf16.gmra.mrb[0].mxu0 %v429
        %v746 = vpop.f32.mrb[0].mxu0
        %v747 = vadd.f32 0.0, %v746
        %v748 = vpop.f32.mrb[0].mxu0
        %v749 = vpop.f32.mrb[0].mxu0
        %v750 = vadd.f32 0.0, %v749
        %v751 = vpop.f32.mrb[0].mxu0
        %752 = vmatprep.mubr.bf16.mxu0 0
        %753 = vmatmul.mubr.bf16.gmra.mrb[0].mxu0 %v432
        %v754 = vpop.f32.mrb[0].mxu0
        %v755 = vadd.f32 0.0, %v754
        %v756 = vpop.f32.mrb[0].mxu0
        %v757 = vpop.f32.mrb[0].mxu0
        %v758 = vadd.f32 0.0, %v757
        %v759 = vpop.f32.mrb[0].mxu0
        %760 = vmatprep.mubr.bf16.mxu0 0
        %761 = vmatmul.mubr.bf16.gmra.mrb[0].mxu0 %v435
        %v762 = vpop.f32.mrb[0].mxu0
        %v763 = vadd.f32 0.0, %v762
        %v764 = vpop.f32.mrb[0].mxu0
        %v765 = vpop.f32.mrb[0].mxu0
        %v766 = vadd.f32 0.0, %v765
        %v767 = vpop.f32.mrb[0].mxu0
        %768 = vmatprep.mubr.bf16.mxu0 0
        %769 = vmatmul.mubr.bf16.gmra.mrb[0].mxu0 %v438
        %v770 = vpop.f32.mrb[0].mxu0
        %v771 = vadd.f32 0.0, %v770
        %v772 = vpop.f32.mrb[0].mxu0
        %v773 = vpop.f32.mrb[0].mxu0
        %v774 = vadd.f32 0.0, %v773
        %v775 = vpop.f32.mrb[0].mxu0
        %776 = vmatprep.mubr.bf16.mxu0 0
        %777 = vmatmul.mubr.bf16.gmra.mrb[0].mxu0 %v441
        %v778 = vpop.f32.mrb[0].mxu0
        %v779 = vadd.f32 0.0, %v778
        %v780 = vpop.f32.mrb[0].mxu0
        %v781 = vpop.f32.mrb[0].mxu0
        %v782 = vadd.f32 0.0, %v781
        %v783 = vpop.f32.mrb[0].mxu0
        %784 = vmatprep.mubr.bf16.mxu0 0
        %785 = vmatmul.mubr.bf16.gmra.mrb[0].mxu0 %v444
        %v786 = vpop.f32.mrb[0].mxu0
        %v787 = vadd.f32 0.0, %v786
        %v788 = vpop.f32.mrb[0].mxu0
        %v789 = vpop.f32.mrb[0].mxu0
        %v790 = vadd.f32 0.0, %v789
        %v791 = vpop.f32.mrb[0].mxu0
        %792 = vmatprep.mubr.bf16.mxu0 0
        %793 = vmatmul.mubr.bf16.gmra.mrb[0].mxu0 %v447
        %v794 = vpop.f32.mrb[0].mxu0
        %v795 = vadd.f32 0.0, %v794
        %v796 = vpop.f32.mrb[0].mxu0
        %v797 = vpop.f32.mrb[0].mxu0
        %v798 = vadd.f32 0.0, %v797
        %v799 = vpop.f32.mrb[0].mxu0
        %800 = vmatprep.mubr.bf16.mxu0 0
        %801 = vmatmul.mubr.bf16.gmra.mrb[0].mxu0 %v450
        %v802 = vpop.f32.mrb[0].mxu0
        %v803 = vadd.f32 0.0, %v802
        %v804 = vpop.f32.mrb[0].mxu0
        %v805 = vpop.f32.mrb[0].mxu0
        %v806 = vadd.f32 0.0, %v805
        %v807 = vpop.f32.mrb[0].mxu0
        %808 = vdwg.mxu0
        %v809 = vpack.c.bf16 %v750, %v747
        %v810 = vpack.c.bf16 %v758, %v755
        %v811 = vpack.c.bf16 %v766, %v763
        %v812 = vpack.c.bf16 %v774, %v771
        %v813 = vpack.c.bf16 %v782, %v779
        %v814 = vpack.c.bf16 %v790, %v787
        %v815 = vpack.c.bf16 %v798, %v795
        %v816 = vpack.c.bf16 %v806, %v803
        %817 = vst [vmem:[#allocation3 + $0x80] sm:$0xff] %v809
        %818 = vst [vmem:[#allocation3 + $0x88] sm:$0xff] %v810
        %819 = vst [vmem:[#allocation3 + $0x90] sm:$0xff] %v811
        %820 = vst [vmem:[#allocation3 + $0x98] sm:$0xff] %v812
        %821 = vst [vmem:[#allocation3 + $0xa0] sm:$0xff] %v813
        %822 = vst [vmem:[#allocation3 + $0xa8] sm:$0xff] %v814
        %823 = vst [vmem:[#allocation3 + $0xb0] sm:$0xff] %v815
        %824 = vst [vmem:[#allocation3 + $0xb8] sm:$0xff] %v816
        %s825 = scalar_lea.vmem %s291, 48 [#allocation7]
        %v826 = vld [vmem:[%s825] sm:$0xf]
        %v827 = vld [vmem:[%s825 + $0x4] sm:$0xf]
        %v828 = vld [vmem:[%s825 + $0x8] sm:$0xf]
        %v829 = vld [vmem:[%s825 + $0xc] sm:$0xf]
        %v834 = vunpack.c.l.b16 %v826
        %v835 = vunpack.c.l.b16 %v827
        %v836 = vunpack.c.l.b16 %v828
        %v837 = vunpack.c.l.b16 %v829
        %v838 = vpack.c.b16 %v835, %v834
        %v839 = vpack.c.b16 %v837, %v836
        %842 = vmatprep.subr.bf16.mxu0 0
        %843 = vmatpush1.bf16.msra.mxu0 %v838
        %844 = vmatprep.subr.bf16.mxu0 0
        %845 = vmatpush1.bf16.msra.mxu0 %v839
        %846 = vmatprep.subr.bf16.mxu0 0
        %847 = vmatpush1.bf16.msra.mxu0 0
        %848 = vmatprep.subr.bf16.mxu0 0
        %849 = vmatpush1.bf16.msra.mxu0 0
        %850 = vmatprep.subr.bf16.mxu0 0
        %851 = vmatpush1.bf16.msra.mxu0 0
        %852 = vmatprep.subr.bf16.mxu0 0
        %853 = vmatpush1.bf16.msra.mxu0 0
        %854 = vmatprep.subr.bf16.mxu0 0
        %855 = vmatpush1.bf16.msra.mxu0 0
        %856 = vmatprep.subr.bf16.mxu0 0
        %857 = vmatpush1.bf16.msra.mxu0 0
        %858 = vmatprep.subr.bf16.mxu0 0
        %859 = vmatpush1.bf16.msra.mxu0 0
        %860 = vmatprep.subr.bf16.mxu0 0
        %861 = vmatpush1.bf16.msra.mxu0 0
        %862 = vmatprep.subr.bf16.mxu0 0
        %863 = vmatpush1.bf16.msra.mxu0 0
        %864 = vmatprep.subr.bf16.mxu0 0
        %865 = vmatpush1.bf16.msra.mxu0 0
        %866 = vmatprep.subr.bf16.mxu0 0
        %867 = vmatpush1.bf16.msra.mxu0 0
        %868 = vmatprep.subr.bf16.mxu0 0
        %869 = vmatpush1.bf16.msra.mxu0 0
        %870 = vmatprep.subr.bf16.mxu0 0
        %871 = vmatpush1.bf16.msra.mxu0 0
        %872 = vmatprep.subr.bf16.mxu0 0
        %873 = vmatpush1.bf16.msra.mxu0 0
        %874 = vmatprep.mubr.bf16.mxu0 0
        %875 = vmatmul.mubr.bf16.gmra.mrb[0].mxu0 %v429
        %v876 = vpop.f32.mrb[0].mxu0
        %v877 = vadd.f32 0.0, %v876
        %v878 = vpop.f32.mrb[0].mxu0
        %v879 = vpop.f32.mrb[0].mxu0
        %v880 = vadd.f32 0.0, %v879
        %v881 = vpop.f32.mrb[0].mxu0
        %882 = vmatprep.mubr.bf16.mxu0 0
        %883 = vmatmul.mubr.bf16.gmra.mrb[0].mxu0 %v432
        %v884 = vpop.f32.mrb[0].mxu0
        %v885 = vadd.f32 0.0, %v884
        %v886 = vpop.f32.mrb[0].mxu0
        %v887 = vpop.f32.mrb[0].mxu0
        %v888 = vadd.f32 0.0, %v887
        %v889 = vpop.f32.mrb[0].mxu0
        %890 = vmatprep.mubr.bf16.mxu0 0
        %891 = vmatmul.mubr.bf16.gmra.mrb[0].mxu0 %v435
        %v892 = vpop.f32.mrb[0].mxu0
        %v893 = vadd.f32 0.0, %v892
        %v894 = vpop.f32.mrb[0].mxu0
        %v895 = vpop.f32.mrb[0].mxu0
        %v896 = vadd.f32 0.0, %v895
        %v897 = vpop.f32.mrb[0].mxu0
        %898 = vmatprep.mubr.bf16.mxu0 0
        %899 = vmatmul.mubr.bf16.gmra.mrb[0].mxu0 %v438
        %v900 = vpop.f32.mrb[0].mxu0
        %v901 = vadd.f32 0.0, %v900
        %v902 = vpop.f32.mrb[0].mxu0
        %v903 = vpop.f32.mrb[0].mxu0
        %v904 = vadd.f32 0.0, %v903
        %v905 = vpop.f32.mrb[0].mxu0
        %906 = vmatprep.mubr.bf16.mxu0 0
        %907 = vmatmul.mubr.bf16.gmra.mrb[0].mxu0 %v441
        %v908 = vpop.f32.mrb[0].mxu0
        %v909 = vadd.f32 0.0, %v908
        %v910 = vpop.f32.mrb[0].mxu0
        %v911 = vpop.f32.mrb[0].mxu0
        %v912 = vadd.f32 0.0, %v911
        %v913 = vpop.f32.mrb[0].mxu0
        %914 = vmatprep.mubr.bf16.mxu0 0
        %915 = vmatmul.mubr.bf16.gmra.mrb[0].mxu0 %v444
        %v916 = vpop.f32.mrb[0].mxu0
        %v917 = vadd.f32 0.0, %v916
        %v918 = vpop.f32.mrb[0].mxu0
        %v919 = vpop.f32.mrb[0].mxu0
        %v920 = vadd.f32 0.0, %v919
        %v921 = vpop.f32.mrb[0].mxu0
        %922 = vmatprep.mubr.bf16.mxu0 0
        %923 = vmatmul.mubr.bf16.gmra.mrb[0].mxu0 %v447
        %v924 = vpop.f32.mrb[0].mxu0
        %v925 = vadd.f32 0.0, %v924
        %v926 = vpop.f32.mrb[0].mxu0
        %v927 = vpop.f32.mrb[0].mxu0
        %v928 = vadd.f32 0.0, %v927
        %v929 = vpop.f32.mrb[0].mxu0
        %930 = vmatprep.mubr.bf16.mxu0 0
        %931 = vmatmul.mubr.bf16.gmra.mrb[0].mxu0 %v450
        %v932 = vpop.f32.mrb[0].mxu0
        %v933 = vadd.f32 0.0, %v932
        %v934 = vpop.f32.mrb[0].mxu0
        %v935 = vpop.f32.mrb[0].mxu0
        %v936 = vadd.f32 0.0, %v935
        %v937 = vpop.f32.mrb[0].mxu0
        %938 = vdwg.mxu0
        %v939 = vpack.c.bf16 %v880, %v877
        %v940 = vpack.c.bf16 %v888, %v885
        %v941 = vpack.c.bf16 %v896, %v893
        %v942 = vpack.c.bf16 %v904, %v901
        %v943 = vpack.c.bf16 %v912, %v909
        %v944 = vpack.c.bf16 %v920, %v917
        %v945 = vpack.c.bf16 %v928, %v925
        %v946 = vpack.c.bf16 %v936, %v933
        %947 = vst [vmem:[#allocation3 + $0xc0] sm:$0xff] %v939
        %948 = vst [vmem:[#allocation3 + $0xc8] sm:$0xff] %v940
        %949 = vst [vmem:[#allocation3 + $0xd0] sm:$0xff] %v941
        %950 = vst [vmem:[#allocation3 + $0xd8] sm:$0xff] %v942
        %951 = vst [vmem:[#allocation3 + $0xe0] sm:$0xff] %v943
        %952 = vst [vmem:[#allocation3 + $0xe8] sm:$0xff] %v944
        %953 = vst [vmem:[#allocation3 + $0xf0] sm:$0xff] %v945
        %954 = vst [vmem:[#allocation3 + $0xf8] sm:$0xff] %v946
        %s955 = scalar_lea.vmem %s291, 64 [#allocation7]
        %v956 = vld [vmem:[%s955] sm:$0xf]
        %v957 = vld [vmem:[%s955 + $0x4] sm:$0xf]
        %v958 = vld [vmem:[%s955 + $0x8] sm:$0xf]
        %v959 = vld [vmem:[%s955 + $0xc] sm:$0xf]
        %v964 = vunpack.c.l.b16 %v956
        %v965 = vunpack.c.l.b16 %v957
        %v966 = vunpack.c.l.b16 %v958
        %v967 = vunpack.c.l.b16 %v959
        %v968 = vpack.c.b16 %v965, %v964
        %v969 = vpack.c.b16 %v967, %v966
        %972 = vmatprep.subr.bf16.mxu0 0
        %973 = vmatpush1.bf16.msra.mxu0 %v968
        %974 = vmatprep.subr.bf16.mxu0 0
        %975 = vmatpush1.bf16.msra.mxu0 %v969
        %976 = vmatprep.subr.bf16.mxu0 0
        %977 = vmatpush1.bf16.msra.mxu0 0
        %978 = vmatprep.subr.bf16.mxu0 0
        %979 = vmatpush1.bf16.msra.mxu0 0
        %980 = vmatprep.subr.bf16.mxu0 0
        %981 = vmatpush1.bf16.msra.mxu0 0
        %982 = vmatprep.subr.bf16.mxu0 0
        %983 = vmatpush1.bf16.msra.mxu0 0
        %984 = vmatprep.subr.bf16.mxu0 0
        %985 = vmatpush1.bf16.msra.mxu0 0
        %986 = vmatprep.subr.bf16.mxu0 0
        %987 = vmatpush1.bf16.msra.mxu0 0
        %988 = vmatprep.subr.bf16.mxu0 0
        %989 = vmatpush1.bf16.msra.mxu0 0
        %990 = vmatprep.subr.bf16.mxu0 0
        %991 = vmatpush1.bf16.msra.mxu0 0
        %992 = vmatprep.subr.bf16.mxu0 0
        %993 = vmatpush1.bf16.msra.mxu0 0
        %994 = vmatprep.subr.bf16.mxu0 0
        %995 = vmatpush1.bf16.msra.mxu0 0
        %996 = vmatprep.subr.bf16.mxu0 0
        %997 = vmatpush1.bf16.msra.mxu0 0
        %998 = vmatprep.subr.bf16.mxu0 0
        %999 = vmatpush1.bf16.msra.mxu0 0
        %1000 = vmatprep.subr.bf16.mxu0 0
        %1001 = vmatpush1.bf16.msra.mxu0 0
        %1002 = vmatprep.subr.bf16.mxu0 0
        %1003 = vmatpush1.bf16.msra.mxu0 0
        %1004 = vmatprep.mubr.bf16.mxu0 0
        %1005 = vmatmul.mubr.bf16.gmra.mrb[0].mxu0 %v429
        %v1006 = vpop.f32.mrb[0].mxu0
        %v1007 = vadd.f32 0.0, %v1006
        %v1008 = vpop.f32.mrb[0].mxu0
        %v1009 = vpop.f32.mrb[0].mxu0
        %v1010 = vadd.f32 0.0, %v1009
        %v1011 = vpop.f32.mrb[0].mxu0
        %1012 = vmatprep.mubr.bf16.mxu0 0
        %1013 = vmatmul.mubr.bf16.gmra.mrb[0].mxu0 %v432
        %v1014 = vpop.f32.mrb[0].mxu0
        %v1015 = vadd.f32 0.0, %v1014
        %v1016 = vpop.f32.mrb[0].mxu0
        %v1017 = vpop.f32.mrb[0].mxu0
        %v1018 = vadd.f32 0.0, %v1017
        %v1019 = vpop.f32.mrb[0].mxu0
        %1020 = vmatprep.mubr.bf16.mxu0 0
        %1021 = vmatmul.mubr.bf16.gmra.mrb[0].mxu0 %v435
        %v1022 = vpop.f32.mrb[0].mxu0
        %v1023 = vadd.f32 0.0, %v1022
        %v1024 = vpop.f32.mrb[0].mxu0
        %v1025 = vpop.f32.mrb[0].mxu0
        %v1026 = vadd.f32 0.0, %v1025
        %v1027 = vpop.f32.mrb[0].mxu0
        %1028 = vmatprep.mubr.bf16.mxu0 0
        %1029 = vmatmul.mubr.bf16.gmra.mrb[0].mxu0 %v438
        %v1030 = vpop.f32.mrb[0].mxu0
        %v1031 = vadd.f32 0.0, %v1030
        %v1032 = vpop.f32.mrb[0].mxu0
        %v1033 = vpop.f32.mrb[0].mxu0
        %v1034 = vadd.f32 0.0, %v1033
        %v1035 = vpop.f32.mrb[0].mxu0
        %1036 = vmatprep.mubr.bf16.mxu0 0
        %1037 = vmatmul.mubr.bf16.gmra.mrb[0].mxu0 %v441
        %v1038 = vpop.f32.mrb[0].mxu0
        %v1039 = vadd.f32 0.0, %v1038
        %v1040 = vpop.f32.mrb[0].mxu0
        %v1041 = vpop.f32.mrb[0].mxu0
        %v1042 = vadd.f32 0.0, %v1041
        %v1043 = vpop.f32.mrb[0].mxu0
        %1044 = vmatprep.mubr.bf16.mxu0 0
        %1045 = vmatmul.mubr.bf16.gmra.mrb[0].mxu0 %v444
        %v1046 = vpop.f32.mrb[0].mxu0
        %v1047 = vadd.f32 0.0, %v1046
        %v1048 = vpop.f32.mrb[0].mxu0
        %v1049 = vpop.f32.mrb[0].mxu0
        %v1050 = vadd.f32 0.0, %v1049
        %v1051 = vpop.f32.mrb[0].mxu0
        %1052 = vmatprep.mubr.bf16.mxu0 0
        %1053 = vmatmul.mubr.bf16.gmra.mrb[0].mxu0 %v447
        %v1054 = vpop.f32.mrb[0].mxu0
        %v1055 = vadd.f32 0.0, %v1054
        %v1056 = vpop.f32.mrb[0].mxu0
        %v1057 = vpop.f32.mrb[0].mxu0
        %v1058 = vadd.f32 0.0, %v1057
        %v1059 = vpop.f32.mrb[0].mxu0
        %1060 = vmatprep.mubr.bf16.mxu0 0
        %1061 = vmatmul.mubr.bf16.gmra.mrb[0].mxu0 %v450
        %v1062 = vpop.f32.mrb[0].mxu0
        %v1063 = vadd.f32 0.0, %v1062
        %v1064 = vpop.f32.mrb[0].mxu0
        %v1065 = vpop.f32.mrb[0].mxu0
        %v1066 = vadd.f32 0.0, %v1065
        %v1067 = vpop.f32.mrb[0].mxu0
        %1068 = vdwg.mxu0
        %v1069 = vpack.c.bf16 %v1010, %v1007
        %v1070 = vpack.c.bf16 %v1018, %v1015
        %v1071 = vpack.c.bf16 %v1026, %v1023
        %v1072 = vpack.c.bf16 %v1034, %v1031
        %v1073 = vpack.c.bf16 %v1042, %v1039
        %v1074 = vpack.c.bf16 %v1050, %v1047
        %v1075 = vpack.c.bf16 %v1058, %v1055
        %v1076 = vpack.c.bf16 %v1066, %v1063
        %1077 = vst [vmem:[#allocation3 + $0x100] sm:$0xff] %v1069
        %1078 = vst [vmem:[#allocation3 + $0x108] sm:$0xff] %v1070
        %1079 = vst [vmem:[#allocation3 + $0x110] sm:$0xff] %v1071
        %1080 = vst [vmem:[#allocation3 + $0x118] sm:$0xff] %v1072
        %1081 = vst [vmem:[#allocation3 + $0x120] sm:$0xff] %v1073
        %1082 = vst [vmem:[#allocation3 + $0x128] sm:$0xff] %v1074
        %1083 = vst [vmem:[#allocation3 + $0x130] sm:$0xff] %v1075
        %1084 = vst [vmem:[#allocation3 + $0x138] sm:$0xff] %v1076
        %s1085 = scalar_lea.vmem %s291, 80 [#allocation7]
        %v1086 = vld [vmem:[%s1085] sm:$0xf]
        %v1087 = vld [vmem:[%s1085 + $0x4] sm:$0xf]
        %v1088 = vld [vmem:[%s1085 + $0x8] sm:$0xf]
        %v1089 = vld [vmem:[%s1085 + $0xc] sm:$0xf]
        %v1094 = vunpack.c.l.b16 %v1086
        %v1095 = vunpack.c.l.b16 %v1087
        %v1096 = vunpack.c.l.b16 %v1088
        %v1097 = vunpack.c.l.b16 %v1089
        %v1098 = vpack.c.b16 %v1095, %v1094
        %v1099 = vpack.c.b16 %v1097, %v1096
        %1102 = vmatprep.subr.bf16.mxu0 0
        %1103 = vmatpush1.bf16.msra.mxu0 %v1098
        %1104 = vmatprep.subr.bf16.mxu0 0
        %1105 = vmatpush1.bf16.msra.mxu0 %v1099
        %1106 = vmatprep.subr.bf16.mxu0 0
        %1107 = vmatpush1.bf16.msra.mxu0 0
        %1108 = vmatprep.subr.bf16.mxu0 0
        %1109 = vmatpush1.bf16.msra.mxu0 0
        %1110 = vmatprep.subr.bf16.mxu0 0
        %1111 = vmatpush1.bf16.msra.mxu0 0
        %1112 = vmatprep.subr.bf16.mxu0 0
        %1113 = vmatpush1.bf16.msra.mxu0 0
        %1114 = vmatprep.subr.bf16.mxu0 0
        %1115 = vmatpush1.bf16.msra.mxu0 0
        %1116 = vmatprep.subr.bf16.mxu0 0
        %1117 = vmatpush1.bf16.msra.mxu0 0
        %1118 = vmatprep.subr.bf16.mxu0 0
        %1119 = vmatpush1.bf16.msra.mxu0 0
        %1120 = vmatprep.subr.bf16.mxu0 0
        %1121 = vmatpush1.bf16.msra.mxu0 0
        %1122 = vmatprep.subr.bf16.mxu0 0
        %1123 = vmatpush1.bf16.msra.mxu0 0
        %1124 = vmatprep.subr.bf16.mxu0 0
        %1125 = vmatpush1.bf16.msra.mxu0 0
        %1126 = vmatprep.subr.bf16.mxu0 0
        %1127 = vmatpush1.bf16.msra.mxu0 0
        %1128 = vmatprep.subr.bf16.mxu0 0
        %1129 = vmatpush1.bf16.msra.mxu0 0
        %1130 = vmatprep.subr.bf16.mxu0 0
        %1131 = vmatpush1.bf16.msra.mxu0 0
        %1132 = vmatprep.subr.bf16.mxu0 0
        %1133 = vmatpush1.bf16.msra.mxu0 0
        %1134 = vmatprep.mubr.bf16.mxu0 0
        %1135 = vmatmul.mubr.bf16.gmra.mrb[0].mxu0 %v429
        %v1136 = vpop.f32.mrb[0].mxu0
        %v1137 = vadd.f32 0.0, %v1136
        %v1138 = vpop.f32.mrb[0].mxu0
        %v1139 = vpop.f32.mrb[0].mxu0
        %v1140 = vadd.f32 0.0, %v1139
        %v1141 = vpop.f32.mrb[0].mxu0
        %1142 = vmatprep.mubr.bf16.mxu0 0
        %1143 = vmatmul.mubr.bf16.gmra.mrb[0].mxu0 %v432
        %v1144 = vpop.f32.mrb[0].mxu0
        %v1145 = vadd.f32 0.0, %v1144
        %v1146 = vpop.f32.mrb[0].mxu0
        %v1147 = vpop.f32.mrb[0].mxu0
        %v1148 = vadd.f32 0.0, %v1147
        %v1149 = vpop.f32.mrb[0].mxu0
        %1150 = vmatprep.mubr.bf16.mxu0 0
        %1151 = vmatmul.mubr.bf16.gmra.mrb[0].mxu0 %v435
        %v1152 = vpop.f32.mrb[0].mxu0
        %v1153 = vadd.f32 0.0, %v1152
        %v1154 = vpop.f32.mrb[0].mxu0
        %v1155 = vpop.f32.mrb[0].mxu0
        %v1156 = vadd.f32 0.0, %v1155
        %v1157 = vpop.f32.mrb[0].mxu0
        %1158 = vmatprep.mubr.bf16.mxu0 0
        %1159 = vmatmul.mubr.bf16.gmra.mrb[0].mxu0 %v438
        %v1160 = vpop.f32.mrb[0].mxu0
        %v1161 = vadd.f32 0.0, %v1160
        %v1162 = vpop.f32.mrb[0].mxu0
        %v1163 = vpop.f32.mrb[0].mxu0
        %v1164 = vadd.f32 0.0, %v1163
        %v1165 = vpop.f32.mrb[0].mxu0
        %1166 = vmatprep.mubr.bf16.mxu0 0
        %1167 = vmatmul.mubr.bf16.gmra.mrb[0].mxu0 %v441
        %v1168 = vpop.f32.mrb[0].mxu0
        %v1169 = vadd.f32 0.0, %v1168
        %v1170 = vpop.f32.mrb[0].mxu0
        %v1171 = vpop.f32.mrb[0].mxu0
        %v1172 = vadd.f32 0.0, %v1171
        %v1173 = vpop.f32.mrb[0].mxu0
        %1174 = vmatprep.mubr.bf16.mxu0 0
        %1175 = vmatmul.mubr.bf16.gmra.mrb[0].mxu0 %v444
        %v1176 = vpop.f32.mrb[0].mxu0
        %v1177 = vadd.f32 0.0, %v1176
        %v1178 = vpop.f32.mrb[0].mxu0
        %v1179 = vpop.f32.mrb[0].mxu0
        %v1180 = vadd.f32 0.0, %v1179
        %v1181 = vpop.f32.mrb[0].mxu0
        %1182 = vmatprep.mubr.bf16.mxu0 0
        %1183 = vmatmul.mubr.bf16.gmra.mrb[0].mxu0 %v447
        %v1184 = vpop.f32.mrb[0].mxu0
        %v1185 = vadd.f32 0.0, %v1184
        %v1186 = vpop.f32.mrb[0].mxu0
        %v1187 = vpop.f32.mrb[0].mxu0
        %v1188 = vadd.f32 0.0, %v1187
        %v1189 = vpop.f32.mrb[0].mxu0
        %1190 = vmatprep.mubr.bf16.mxu0 0
        %1191 = vmatmul.mubr.bf16.gmra.mrb[0].mxu0 %v450
        %v1192 = vpop.f32.mrb[0].mxu0
        %v1193 = vadd.f32 0.0, %v1192
        %v1194 = vpop.f32.mrb[0].mxu0
        %v1195 = vpop.f32.mrb[0].mxu0
        %v1196 = vadd.f32 0.0, %v1195
        %v1197 = vpop.f32.mrb[0].mxu0
        %1198 = vdwg.mxu0
        %v1199 = vpack.c.bf16 %v1140, %v1137
        %v1200 = vpack.c.bf16 %v1148, %v1145
        %v1201 = vpack.c.bf16 %v1156, %v1153
        %v1202 = vpack.c.bf16 %v1164, %v1161
        %v1203 = vpack.c.bf16 %v1172, %v1169
        %v1204 = vpack.c.bf16 %v1180, %v1177
        %v1205 = vpack.c.bf16 %v1188, %v1185
        %v1206 = vpack.c.bf16 %v1196, %v1193
        %1207 = vst [vmem:[#allocation3 + $0x140] sm:$0xff] %v1199
        %1208 = vst [vmem:[#allocation3 + $0x148] sm:$0xff] %v1200
        %1209 = vst [vmem:[#allocation3 + $0x150] sm:$0xff] %v1201
        %1210 = vst [vmem:[#allocation3 + $0x158] sm:$0xff] %v1202
        %1211 = vst [vmem:[#allocation3 + $0x160] sm:$0xff] %v1203
        %1212 = vst [vmem:[#allocation3 + $0x168] sm:$0xff] %v1204
        %1213 = vst [vmem:[#allocation3 + $0x170] sm:$0xff] %v1205
        %1214 = vst [vmem:[#allocation3 + $0x178] sm:$0xff] %v1206
        %s1215 = scalar_lea.vmem %s291, 96 [#allocation7]
        %v1216 = vld [vmem:[%s1215] sm:$0xf]
        %v1217 = vld [vmem:[%s1215 + $0x4] sm:$0xf]
        %v1218 = vld [vmem:[%s1215 + $0x8] sm:$0xf]
        %v1219 = vld [vmem:[%s1215 + $0xc] sm:$0xf]
        %v1224 = vunpack.c.l.b16 %v1216
        %v1225 = vunpack.c.l.b16 %v1217
        %v1226 = vunpack.c.l.b16 %v1218
        %v1227 = vunpack.c.l.b16 %v1219
        %v1228 = vpack.c.b16 %v1225, %v1224
        %v1229 = vpack.c.b16 %v1227, %v1226
        %1232 = vmatprep.subr.bf16.mxu0 0
        %1233 = vmatpush1.bf16.msra.mxu0 %v1228
        %1234 = vmatprep.subr.bf16.mxu0 0
        %1235 = vmatpush1.bf16.msra.mxu0 %v1229
        %1236 = vmatprep.subr.bf16.mxu0 0
        %1237 = vmatpush1.bf16.msra.mxu0 0
        %1238 = vmatprep.subr.bf16.mxu0 0
        %1239 = vmatpush1.bf16.msra.mxu0 0
        %1240 = vmatprep.subr.bf16.mxu0 0
        %1241 = vmatpush1.bf16.msra.mxu0 0
        %1242 = vmatprep.subr.bf16.mxu0 0
        %1243 = vmatpush1.bf16.msra.mxu0 0
        %1244 = vmatprep.subr.bf16.mxu0 0
        %1245 = vmatpush1.bf16.msra.mxu0 0
        %1246 = vmatprep.subr.bf16.mxu0 0
        %1247 = vmatpush1.bf16.msra.mxu0 0
        %1248 = vmatprep.subr.bf16.mxu0 0
        %1249 = vmatpush1.bf16.msra.mxu0 0
        %1250 = vmatprep.subr.bf16.mxu0 0
        %1251 = vmatpush1.bf16.msra.mxu0 0
        %1252 = vmatprep.subr.bf16.mxu0 0
        %1253 = vmatpush1.bf16.msra.mxu0 0
        %1254 = vmatprep.subr.bf16.mxu0 0
        %1255 = vmatpush1.bf16.msra.mxu0 0
        %1256 = vmatprep.subr.bf16.mxu0 0
        %1257 = vmatpush1.bf16.msra.mxu0 0
        %1258 = vmatprep.subr.bf16.mxu0 0
        %1259 = vmatpush1.bf16.msra.mxu0 0
        %1260 = vmatprep.subr.bf16.mxu0 0
        %1261 = vmatpush1.bf16.msra.mxu0 0
        %1262 = vmatprep.subr.bf16.mxu0 0
        %1263 = vmatpush1.bf16.msra.mxu0 0
        %1264 = vmatprep.mubr.bf16.mxu0 0
        %1265 = vmatmul.mubr.bf16.gmra.mrb[0].mxu0 %v429
        %v1266 = vpop.f32.mrb[0].mxu0
        %v1267 = vadd.f32 0.0, %v1266
        %v1268 = vpop.f32.mrb[0].mxu0
        %v1269 = vpop.f32.mrb[0].mxu0
        %v1270 = vadd.f32 0.0, %v1269
        %v1271 = vpop.f32.mrb[0].mxu0
        %1272 = vmatprep.mubr.bf16.mxu0 0
        %1273 = vmatmul.mubr.bf16.gmra.mrb[0].mxu0 %v432
        %v1274 = vpop.f32.mrb[0].mxu0
        %v1275 = vadd.f32 0.0, %v1274
        %v1276 = vpop.f32.mrb[0].mxu0
        %v1277 = vpop.f32.mrb[0].mxu0
        %v1278 = vadd.f32 0.0, %v1277
        %v1279 = vpop.f32.mrb[0].mxu0
        %1280 = vmatprep.mubr.bf16.mxu0 0
        %1281 = vmatmul.mubr.bf16.gmra.mrb[0].mxu0 %v435
        %v1282 = vpop.f32.mrb[0].mxu0
        %v1283 = vadd.f32 0.0, %v1282
        %v1284 = vpop.f32.mrb[0].mxu0
        %v1285 = vpop.f32.mrb[0].mxu0
        %v1286 = vadd.f32 0.0, %v1285
        %v1287 = vpop.f32.mrb[0].mxu0
        %1288 = vmatprep.mubr.bf16.mxu0 0
        %1289 = vmatmul.mubr.bf16.gmra.mrb[0].mxu0 %v438
        %v1290 = vpop.f32.mrb[0].mxu0
        %v1291 = vadd.f32 0.0, %v1290
        %v1292 = vpop.f32.mrb[0].mxu0
        %v1293 = vpop.f32.mrb[0].mxu0
        %v1294 = vadd.f32 0.0, %v1293
        %v1295 = vpop.f32.mrb[0].mxu0
        %1296 = vmatprep.mubr.bf16.mxu0 0
        %1297 = vmatmul.mubr.bf16.gmra.mrb[0].mxu0 %v441
        %v1298 = vpop.f32.mrb[0].mxu0
        %v1299 = vadd.f32 0.0, %v1298
        %v1300 = vpop.f32.mrb[0].mxu0
        %v1301 = vpop.f32.mrb[0].mxu0
        %v1302 = vadd.f32 0.0, %v1301
        %v1303 = vpop.f32.mrb[0].mxu0
        %1304 = vmatprep.mubr.bf16.mxu0 0
        %1305 = vmatmul.mubr.bf16.gmra.mrb[0].mxu0 %v444
        %v1306 = vpop.f32.mrb[0].mxu0
        %v1307 = vadd.f32 0.0, %v1306
        %v1308 = vpop.f32.mrb[0].mxu0
        %v1309 = vpop.f32.mrb[0].mxu0
        %v1310 = vadd.f32 0.0, %v1309
        %v1311 = vpop.f32.mrb[0].mxu0
        %1312 = vmatprep.mubr.bf16.mxu0 0
        %1313 = vmatmul.mubr.bf16.gmra.mrb[0].mxu0 %v447
        %v1314 = vpop.f32.mrb[0].mxu0
        %v1315 = vadd.f32 0.0, %v1314
        %v1316 = vpop.f32.mrb[0].mxu0
        %v1317 = vpop.f32.mrb[0].mxu0
        %v1318 = vadd.f32 0.0, %v1317
        %v1319 = vpop.f32.mrb[0].mxu0
        %1320 = vmatprep.mubr.bf16.mxu0 0
        %1321 = vmatmul.mubr.bf16.gmra.mrb[0].mxu0 %v450
        %v1322 = vpop.f32.mrb[0].mxu0
        %v1323 = vadd.f32 0.0, %v1322
        %v1324 = vpop.f32.mrb[0].mxu0
        %v1325 = vpop.f32.mrb[0].mxu0
        %v1326 = vadd.f32 0.0, %v1325
        %v1327 = vpop.f32.mrb[0].mxu0
        %1328 = vdwg.mxu0
        %v1329 = vpack.c.bf16 %v1270, %v1267
        %v1330 = vpack.c.bf16 %v1278, %v1275
        %v1331 = vpack.c.bf16 %v1286, %v1283
        %v1332 = vpack.c.bf16 %v1294, %v1291
        %v1333 = vpack.c.bf16 %v1302, %v1299
        %v1334 = vpack.c.bf16 %v1310, %v1307
        %v1335 = vpack.c.bf16 %v1318, %v1315
        %v1336 = vpack.c.bf16 %v1326, %v1323
        %1337 = vst [vmem:[#allocation3 + $0x180] sm:$0xff] %v1329
        %1338 = vst [vmem:[#allocation3 + $0x188] sm:$0xff] %v1330
        %1339 = vst [vmem:[#allocation3 + $0x190] sm:$0xff] %v1331
        %1340 = vst [vmem:[#allocation3 + $0x198] sm:$0xff] %v1332
        %1341 = vst [vmem:[#allocation3 + $0x1a0] sm:$0xff] %v1333
        %1342 = vst [vmem:[#allocation3 + $0x1a8] sm:$0xff] %v1334
        %1343 = vst [vmem:[#allocation3 + $0x1b0] sm:$0xff] %v1335
        %1344 = vst [vmem:[#allocation3 + $0x1b8] sm:$0xff] %v1336
        %s1345 = scalar_lea.vmem %s291, 112 [#allocation7]
        %v1346 = vld [vmem:[%s1345] sm:$0xf]
        %v1347 = vld [vmem:[%s1345 + $0x4] sm:$0xf]
        %v1348 = vld [vmem:[%s1345 + $0x8] sm:$0xf]
        %v1349 = vld [vmem:[%s1345 + $0xc] sm:$0xf]
        %v1354 = vunpack.c.l.b16 %v1346
        %v1355 = vunpack.c.l.b16 %v1347
        %v1356 = vunpack.c.l.b16 %v1348
        %v1357 = vunpack.c.l.b16 %v1349
        %v1358 = vpack.c.b16 %v1355, %v1354
        %v1359 = vpack.c.b16 %v1357, %v1356
        %1362 = vmatprep.subr.bf16.mxu0 0
        %1363 = vmatpush1.bf16.msra.mxu0 %v1358
        %1364 = vmatprep.subr.bf16.mxu0 0
        %1365 = vmatpush1.bf16.msra.mxu0 %v1359
        %1366 = vmatprep.subr.bf16.mxu0 0
        %1367 = vmatpush1.bf16.msra.mxu0 0
        %1368 = vmatprep.subr.bf16.mxu0 0
        %1369 = vmatpush1.bf16.msra.mxu0 0
        %1370 = vmatprep.subr.bf16.mxu0 0
        %1371 = vmatpush1.bf16.msra.mxu0 0
        %1372 = vmatprep.subr.bf16.mxu0 0
        %1373 = vmatpush1.bf16.msra.mxu0 0
        %1374 = vmatprep.subr.bf16.mxu0 0
        %1375 = vmatpush1.bf16.msra.mxu0 0
        %1376 = vmatprep.subr.bf16.mxu0 0
        %1377 = vmatpush1.bf16.msra.mxu0 0
        %1378 = vmatprep.subr.bf16.mxu0 0
        %1379 = vmatpush1.bf16.msra.mxu0 0
        %1380 = vmatprep.subr.bf16.mxu0 0
        %1381 = vmatpush1.bf16.msra.mxu0 0
        %1382 = vmatprep.subr.bf16.mxu0 0
        %1383 = vmatpush1.bf16.msra.mxu0 0
        %1384 = vmatprep.subr.bf16.mxu0 0
        %1385 = vmatpush1.bf16.msra.mxu0 0
        %1386 = vmatprep.subr.bf16.mxu0 0
        %1387 = vmatpush1.bf16.msra.mxu0 0
        %1388 = vmatprep.subr.bf16.mxu0 0
        %1389 = vmatpush1.bf16.msra.mxu0 0
        %1390 = vmatprep.subr.bf16.mxu0 0
        %1391 = vmatpush1.bf16.msra.mxu0 0
        %1392 = vmatprep.subr.bf16.mxu0 0
        %1393 = vmatpush1.bf16.msra.mxu0 0
        %1394 = vmatprep.mubr.bf16.mxu0 0
        %1395 = vmatmul.mubr.bf16.gmra.mrb[0].mxu0 %v429
        %v1396 = vpop.f32.mrb[0].mxu0
        %v1397 = vadd.f32 0.0, %v1396
        %v1398 = vpop.f32.mrb[0].mxu0
        %v1399 = vpop.f32.mrb[0].mxu0
        %v1400 = vadd.f32 0.0, %v1399
        %v1401 = vpop.f32.mrb[0].mxu0
        %1402 = vmatprep.mubr.bf16.mxu0 0
        %1403 = vmatmul.mubr.bf16.gmra.mrb[0].mxu0 %v432
        %v1404 = vpop.f32.mrb[0].mxu0
        %v1405 = vadd.f32 0.0, %v1404
        %v1406 = vpop.f32.mrb[0].mxu0
        %v1407 = vpop.f32.mrb[0].mxu0
        %v1408 = vadd.f32 0.0, %v1407
        %v1409 = vpop.f32.mrb[0].mxu0
        %1410 = vmatprep.mubr.bf16.mxu0 0
        %1411 = vmatmul.mubr.bf16.gmra.mrb[0].mxu0 %v435
        %v1412 = vpop.f32.mrb[0].mxu0
        %v1413 = vadd.f32 0.0, %v1412
        %v1414 = vpop.f32.mrb[0].mxu0
        %v1415 = vpop.f32.mrb[0].mxu0
        %v1416 = vadd.f32 0.0, %v1415
        %v1417 = vpop.f32.mrb[0].mxu0
        %1418 = vmatprep.mubr.bf16.mxu0 0
        %1419 = vmatmul.mubr.bf16.gmra.mrb[0].mxu0 %v438
        %v1420 = vpop.f32.mrb[0].mxu0
        %v1421 = vadd.f32 0.0, %v1420
        %v1422 = vpop.f32.mrb[0].mxu0
        %v1423 = vpop.f32.mrb[0].mxu0
        %v1424 = vadd.f32 0.0, %v1423
        %v1425 = vpop.f32.mrb[0].mxu0
        %1426 = vmatprep.mubr.bf16.mxu0 0
        %1427 = vmatmul.mubr.bf16.gmra.mrb[0].mxu0 %v441
        %v1428 = vpop.f32.mrb[0].mxu0
        %v1429 = vadd.f32 0.0, %v1428
        %v1430 = vpop.f32.mrb[0].mxu0
        %v1431 = vpop.f32.mrb[0].mxu0
        %v1432 = vadd.f32 0.0, %v1431
        %v1433 = vpop.f32.mrb[0].mxu0
        %1434 = vmatprep.mubr.bf16.mxu0 0
        %1435 = vmatmul.mubr.bf16.gmra.mrb[0].mxu0 %v444
        %v1436 = vpop.f32.mrb[0].mxu0
        %v1437 = vadd.f32 0.0, %v1436
        %v1438 = vpop.f32.mrb[0].mxu0
        %v1439 = vpop.f32.mrb[0].mxu0
        %v1440 = vadd.f32 0.0, %v1439
        %v1441 = vpop.f32.mrb[0].mxu0
        %1442 = vmatprep.mubr.bf16.mxu0 0
        %1443 = vmatmul.mubr.bf16.gmra.mrb[0].mxu0 %v447
        %v1444 = vpop.f32.mrb[0].mxu0
        %v1445 = vadd.f32 0.0, %v1444
        %v1446 = vpop.f32.mrb[0].mxu0
        %v1447 = vpop.f32.mrb[0].mxu0
        %v1448 = vadd.f32 0.0, %v1447
        %v1449 = vpop.f32.mrb[0].mxu0
        %1450 = vmatprep.mubr.bf16.mxu0 0
        %1451 = vmatmul.mubr.bf16.gmra.mrb[0].mxu0 %v450
        %v1452 = vpop.f32.mrb[0].mxu0
        %v1453 = vadd.f32 0.0, %v1452
        %v1454 = vpop.f32.mrb[0].mxu0
        %v1455 = vpop.f32.mrb[0].mxu0
        %v1456 = vadd.f32 0.0, %v1455
        %v1457 = vpop.f32.mrb[0].mxu0
        %1458 = vdwg.mxu0
        %v1459 = vpack.c.bf16 %v1400, %v1397
        %v1460 = vpack.c.bf16 %v1408, %v1405
        %v1461 = vpack.c.bf16 %v1416, %v1413
        %v1462 = vpack.c.bf16 %v1424, %v1421
        %v1463 = vpack.c.bf16 %v1432, %v1429
        %v1464 = vpack.c.bf16 %v1440, %v1437
        %v1465 = vpack.c.bf16 %v1448, %v1445
        %v1466 = vpack.c.bf16 %v1456, %v1453
        %1467 = vst [vmem:[#allocation3 + $0x1c0] sm:$0xff] %v1459
        %1468 = vst [vmem:[#allocation3 + $0x1c8] sm:$0xff] %v1460
        %1469 = vst [vmem:[#allocation3 + $0x1d0] sm:$0xff] %v1461
        %1470 = vst [vmem:[#allocation3 + $0x1d8] sm:$0xff] %v1462
        %1471 = vst [vmem:[#allocation3 + $0x1e0] sm:$0xff] %v1463
        %1472 = vst [vmem:[#allocation3 + $0x1e8] sm:$0xff] %v1464
        %1473 = vst [vmem:[#allocation3 + $0x1f0] sm:$0xff] %v1465
        %1474 = vst [vmem:[#allocation3 + $0x1f8] sm:$0xff] %v1466
        %v1475 = vld [vmem:[%s282] sm:$0xff]
        %v1476 = vld [vmem:[%s282 + $0x8] sm:$0xff]
        %v1477 = vld [vmem:[%s282 + $0x10] sm:$0xff]
        %v1478 = vld [vmem:[%s282 + $0x18] sm:$0xff]
        %v1479 = vld [vmem:[%s282 + $0x20] sm:$0xff]
        %v1480 = vld [vmem:[%s282 + $0x28] sm:$0xff]
        %v1481 = vld [vmem:[%s282 + $0x30] sm:$0xff]
        %v1482 = vld [vmem:[%s282 + $0x38] sm:$0xff]
        %v1483 = vld [vmem:[%s282 + $0x40] sm:$0xff]
        %v1484 = vld [vmem:[%s282 + $0x48] sm:$0xff]
        %v1485 = vld [vmem:[%s282 + $0x50] sm:$0xff]
        %v1486 = vld [vmem:[%s282 + $0x58] sm:$0xff]
        %v1487 = vld [vmem:[%s282 + $0x60] sm:$0xff]
        %v1488 = vld [vmem:[%s282 + $0x68] sm:$0xff]
        %v1489 = vld [vmem:[%s282 + $0x70] sm:$0xff]
        %v1490 = vld [vmem:[%s282 + $0x78] sm:$0xff]
        %v1491 = vld [vmem:[%s282 + $0x80] sm:$0xff]
        %v1492 = vld [vmem:[%s282 + $0x88] sm:$0xff]
        %v1493 = vld [vmem:[%s282 + $0x90] sm:$0xff]
        %v1494 = vld [vmem:[%s282 + $0x98] sm:$0xff]
        %v1495 = vld [vmem:[%s282 + $0xa0] sm:$0xff]
        %v1496 = vld [vmem:[%s282 + $0xa8] sm:$0xff]
        %v1497 = vld [vmem:[%s282 + $0xb0] sm:$0xff]
        %v1498 = vld [vmem:[%s282 + $0xb8] sm:$0xff]
        %v1499 = vld [vmem:[%s282 + $0xc0] sm:$0xff]
        %v1500 = vld [vmem:[%s282 + $0xc8] sm:$0xff]
        %v1501 = vld [vmem:[%s282 + $0xd0] sm:$0xff]
        %v1502 = vld [vmem:[%s282 + $0xd8] sm:$0xff]
        %v1503 = vld [vmem:[%s282 + $0xe0] sm:$0xff]
        %v1504 = vld [vmem:[%s282 + $0xe8] sm:$0xff]
        %v1505 = vld [vmem:[%s282 + $0xf0] sm:$0xff]
        %v1506 = vld [vmem:[%s282 + $0xf8] sm:$0xff]
        %v1507 = vld [vmem:[%s282 + $0x100] sm:$0xff]
        %v1508 = vld [vmem:[%s282 + $0x108] sm:$0xff]
        %v1509 = vld [vmem:[%s282 + $0x110] sm:$0xff]
        %v1510 = vld [vmem:[%s282 + $0x118] sm:$0xff]
        %v1511 = vld [vmem:[%s282 + $0x120] sm:$0xff]
        %v1512 = vld [vmem:[%s282 + $0x128] sm:$0xff]
        %v1513 = vld [vmem:[%s282 + $0x130] sm:$0xff]
        %v1514 = vld [vmem:[%s282 + $0x138] sm:$0xff]
        %v1515 = vld [vmem:[%s282 + $0x140] sm:$0xff]
        %v1516 = vld [vmem:[%s282 + $0x148] sm:$0xff]
        %v1517 = vld [vmem:[%s282 + $0x150] sm:$0xff]
        %v1518 = vld [vmem:[%s282 + $0x158] sm:$0xff]
        %v1519 = vld [vmem:[%s282 + $0x160] sm:$0xff]
        %v1520 = vld [vmem:[%s282 + $0x168] sm:$0xff]
        %v1521 = vld [vmem:[%s282 + $0x170] sm:$0xff]
        %v1522 = vld [vmem:[%s282 + $0x178] sm:$0xff]
        %v1523 = vld [vmem:[%s282 + $0x180] sm:$0xff]
        %v1524 = vld [vmem:[%s282 + $0x188] sm:$0xff]
        %v1525 = vld [vmem:[%s282 + $0x190] sm:$0xff]
        %v1526 = vld [vmem:[%s282 + $0x198] sm:$0xff]
        %v1527 = vld [vmem:[%s282 + $0x1a0] sm:$0xff]
        %v1528 = vld [vmem:[%s282 + $0x1a8] sm:$0xff]
        %v1529 = vld [vmem:[%s282 + $0x1b0] sm:$0xff]
        %v1530 = vld [vmem:[%s282 + $0x1b8] sm:$0xff]
        %v1531 = vld [vmem:[%s282 + $0x1c0] sm:$0xff]
        %v1532 = vld [vmem:[%s282 + $0x1c8] sm:$0xff]
        %v1533 = vld [vmem:[%s282 + $0x1d0] sm:$0xff]
        %v1534 = vld [vmem:[%s282 + $0x1d8] sm:$0xff]
        %v1535 = vld [vmem:[%s282 + $0x1e0] sm:$0xff]
        %v1536 = vld [vmem:[%s282 + $0x1e8] sm:$0xff]
        %v1537 = vld [vmem:[%s282 + $0x1f0] sm:$0xff]
        %v1538 = vld [vmem:[%s282 + $0x1f8] sm:$0xff]
        %v1539 = vld [vmem:[#allocation3] sm:$0xff]
        %v1540 = vld [vmem:[#allocation3 + $0x8] sm:$0xff]
        %v1541 = vld [vmem:[#allocation3 + $0x10] sm:$0xff]
        %v1542 = vld [vmem:[#allocation3 + $0x18] sm:$0xff]
        %v1543 = vld [vmem:[#allocation3 + $0x20] sm:$0xff]
        %v1544 = vld [vmem:[#allocation3 + $0x28] sm:$0xff]
        %v1545 = vld [vmem:[#allocation3 + $0x30] sm:$0xff]
        %v1546 = vld [vmem:[#allocation3 + $0x38] sm:$0xff]
        %v1547 = vld [vmem:[#allocation3 + $0x40] sm:$0xff]
        %v1548 = vld [vmem:[#allocation3 + $0x48] sm:$0xff]
        %v1549 = vld [vmem:[#allocation3 + $0x50] sm:$0xff]
        %v1550 = vld [vmem:[#allocation3 + $0x58] sm:$0xff]
        %v1551 = vld [vmem:[#allocation3 + $0x60] sm:$0xff]
        %v1552 = vld [vmem:[#allocation3 + $0x68] sm:$0xff]
        %v1553 = vld [vmem:[#allocation3 + $0x70] sm:$0xff]
        %v1554 = vld [vmem:[#allocation3 + $0x78] sm:$0xff]
        %v1555 = vld [vmem:[#allocation3 + $0x80] sm:$0xff]
        %v1556 = vld [vmem:[#allocation3 + $0x88] sm:$0xff]
        %v1557 = vld [vmem:[#allocation3 + $0x90] sm:$0xff]
        %v1558 = vld [vmem:[#allocation3 + $0x98] sm:$0xff]
        %v1559 = vld [vmem:[#allocation3 + $0xa0] sm:$0xff]
        %v1560 = vld [vmem:[#allocation3 + $0xa8] sm:$0xff]
        %v1561 = vld [vmem:[#allocation3 + $0xb0] sm:$0xff]
        %v1562 = vld [vmem:[#allocation3 + $0xb8] sm:$0xff]
        %v1563 = vld [vmem:[#allocation3 + $0xc0] sm:$0xff]
        %v1564 = vld [vmem:[#allocation3 + $0xc8] sm:$0xff]
        %v1565 = vld [vmem:[#allocation3 + $0xd0] sm:$0xff]
        %v1566 = vld [vmem:[#allocation3 + $0xd8] sm:$0xff]
        %v1567 = vld [vmem:[#allocation3 + $0xe0] sm:$0xff]
        %v1568 = vld [vmem:[#allocation3 + $0xe8] sm:$0xff]
        %v1569 = vld [vmem:[#allocation3 + $0xf0] sm:$0xff]
        %v1570 = vld [vmem:[#allocation3 + $0xf8] sm:$0xff]
        %v1571 = vld [vmem:[#allocation3 + $0x100] sm:$0xff]
        %v1572 = vld [vmem:[#allocation3 + $0x108] sm:$0xff]
        %v1573 = vld [vmem:[#allocation3 + $0x110] sm:$0xff]
        %v1574 = vld [vmem:[#allocation3 + $0x118] sm:$0xff]
        %v1575 = vld [vmem:[#allocation3 + $0x120] sm:$0xff]
        %v1576 = vld [vmem:[#allocation3 + $0x128] sm:$0xff]
        %v1577 = vld [vmem:[#allocation3 + $0x130] sm:$0xff]
        %v1578 = vld [vmem:[#allocation3 + $0x138] sm:$0xff]
        %v1579 = vld [vmem:[#allocation3 + $0x140] sm:$0xff]
        %v1580 = vld [vmem:[#allocation3 + $0x148] sm:$0xff]
        %v1581 = vld [vmem:[#allocation3 + $0x150] sm:$0xff]
        %v1582 = vld [vmem:[#allocation3 + $0x158] sm:$0xff]
        %v1583 = vld [vmem:[#allocation3 + $0x160] sm:$0xff]
        %v1584 = vld [vmem:[#allocation3 + $0x168] sm:$0xff]
        %v1585 = vld [vmem:[#allocation3 + $0x170] sm:$0xff]
        %v1586 = vld [vmem:[#allocation3 + $0x178] sm:$0xff]
        %v1587 = vld [vmem:[#allocation3 + $0x180] sm:$0xff]
        %v1588 = vld [vmem:[#allocation3 + $0x188] sm:$0xff]
        %v1589 = vld [vmem:[#allocation3 + $0x190] sm:$0xff]
        %v1590 = vld [vmem:[#allocation3 + $0x198] sm:$0xff]
        %v1591 = vld [vmem:[#allocation3 + $0x1a0] sm:$0xff]
        %v1592 = vld [vmem:[#allocation3 + $0x1a8] sm:$0xff]
        %v1593 = vld [vmem:[#allocation3 + $0x1b0] sm:$0xff]
        %v1594 = vld [vmem:[#allocation3 + $0x1b8] sm:$0xff]
        %v1595 = vld [vmem:[#allocation3 + $0x1c0] sm:$0xff]
        %v1596 = vld [vmem:[#allocation3 + $0x1c8] sm:$0xff]
        %v1597 = vld [vmem:[#allocation3 + $0x1d0] sm:$0xff]
        %v1598 = vld [vmem:[#allocation3 + $0x1d8] sm:$0xff]
        %v1599 = vld [vmem:[#allocation3 + $0x1e0] sm:$0xff]
        %v1600 = vld [vmem:[#allocation3 + $0x1e8] sm:$0xff]
        %v1601 = vld [vmem:[#allocation3 + $0x1f0] sm:$0xff]
        %v1602 = vld [vmem:[#allocation3 + $0x1f8] sm:$0xff]
        %v1603 = vld [vmem:[%s345] sm:$0xf]
        %v1604 = vld [vmem:[%s345 + $0x4] sm:$0xf]
        %v1605 = vld [vmem:[%s345 + $0x8] sm:$0xf]
        %v1606 = vld [vmem:[%s345 + $0xc] sm:$0xf]
        %v1611 = vunpack.c.l.b16 %v1603
        %v1612 = vunpack.c.l.b16 %v1604
        %v1613 = vunpack.c.l.b16 %v1605
        %v1614 = vunpack.c.l.b16 %v1606
        %v1615 = vpack.c.b16 %v1612, %v1611
        %v1616 = vpack.c.b16 %v1614, %v1613
        %1619 = vmatprep.subr.bf16.mxu0 0
        %1620 = vmatpush1.bf16.msra.mxu0 %v1615
        %1621 = vmatprep.subr.bf16.mxu0 0
        %1622 = vmatpush1.bf16.msra.mxu0 %v1616
        %1623 = vmatprep.subr.bf16.mxu0 0
        %1624 = vmatpush1.bf16.msra.mxu0 0
        %1625 = vmatprep.subr.bf16.mxu0 0
        %1626 = vmatpush1.bf16.msra.mxu0 0
        %1627 = vmatprep.subr.bf16.mxu0 0
        %1628 = vmatpush1.bf16.msra.mxu0 0
        %1629 = vmatprep.subr.bf16.mxu0 0
        %1630 = vmatpush1.bf16.msra.mxu0 0
        %1631 = vmatprep.subr.bf16.mxu0 0
        %1632 = vmatpush1.bf16.msra.mxu0 0
        %1633 = vmatprep.subr.bf16.mxu0 0
        %1634 = vmatpush1.bf16.msra.mxu0 0
        %1635 = vmatprep.subr.bf16.mxu0 0
        %1636 = vmatpush1.bf16.msra.mxu0 0
        %1637 = vmatprep.subr.bf16.mxu0 0
        %1638 = vmatpush1.bf16.msra.mxu0 0
        %1639 = vmatprep.subr.bf16.mxu0 0
        %1640 = vmatpush1.bf16.msra.mxu0 0
        %1641 = vmatprep.subr.bf16.mxu0 0
        %1642 = vmatpush1.bf16.msra.mxu0 0
        %1643 = vmatprep.subr.bf16.mxu0 0
        %1644 = vmatpush1.bf16.msra.mxu0 0
        %1645 = vmatprep.subr.bf16.mxu0 0
        %1646 = vmatpush1.bf16.msra.mxu0 0
        %1647 = vmatprep.subr.bf16.mxu0 0
        %1648 = vmatpush1.bf16.msra.mxu0 0
        %1649 = vmatprep.subr.bf16.mxu0 0
        %1650 = vmatpush1.bf16.msra.mxu0 0
        %1651 = vmatprep.mubr.bf16.mxu0 0
        %1652 = vmatmul.mubr.bf16.gmra.mrb[0].mxu0 %v429
        %v1653 = vpop.f32.mrb[0].mxu0
        %v1654 = vadd.f32 0.0, %v1653
        %v1655 = vpop.f32.mrb[0].mxu0
        %v1656 = vpop.f32.mrb[0].mxu0
        %v1657 = vadd.f32 0.0, %v1656
        %v1658 = vpop.f32.mrb[0].mxu0
        %1659 = vmatprep.mubr.bf16.mxu0 0
        %1660 = vmatmul.mubr.bf16.gmra.mrb[0].mxu0 %v432
        %v1661 = vpop.f32.mrb[0].mxu0
        %v1662 = vadd.f32 0.0, %v1661
        %v1663 = vpop.f32.mrb[0].mxu0
        %v1664 = vpop.f32.mrb[0].mxu0
        %v1665 = vadd.f32 0.0, %v1664
        %v1666 = vpop.f32.mrb[0].mxu0
        %1667 = vmatprep.mubr.bf16.mxu0 0
        %1668 = vmatmul.mubr.bf16.gmra.mrb[0].mxu0 %v435
        %v1669 = vpop.f32.mrb[0].mxu0
        %v1670 = vadd.f32 0.0, %v1669
        %v1671 = vpop.f32.mrb[0].mxu0
        %v1672 = vpop.f32.mrb[0].mxu0
        %v1673 = vadd.f32 0.0, %v1672
        %v1674 = vpop.f32.mrb[0].mxu0
        %1675 = vmatprep.mubr.bf16.mxu0 0
        %1676 = vmatmul.mubr.bf16.gmra.mrb[0].mxu0 %v438
        %v1677 = vpop.f32.mrb[0].mxu0
        %v1678 = vadd.f32 0.0, %v1677
        %v1679 = vpop.f32.mrb[0].mxu0
        %v1680 = vpop.f32.mrb[0].mxu0
        %v1681 = vadd.f32 0.0, %v1680
        %v1682 = vpop.f32.mrb[0].mxu0
        %1683 = vmatprep.mubr.bf16.mxu0 0
        %1684 = vmatmul.mubr.bf16.gmra.mrb[0].mxu0 %v441
        %v1685 = vpop.f32.mrb[0].mxu0
        %v1686 = vadd.f32 0.0, %v1685
        %v1687 = vpop.f32.mrb[0].mxu0
        %v1688 = vpop.f32.mrb[0].mxu0
        %v1689 = vadd.f32 0.0, %v1688
        %v1690 = vpop.f32.mrb[0].mxu0
        %1691 = vmatprep.mubr.bf16.mxu0 0
        %1692 = vmatmul.mubr.bf16.gmra.mrb[0].mxu0 %v444
        %v1693 = vpop.f32.mrb[0].mxu0
        %v1694 = vadd.f32 0.0, %v1693
        %v1695 = vpop.f32.mrb[0].mxu0
        %v1696 = vpop.f32.mrb[0].mxu0
        %v1697 = vadd.f32 0.0, %v1696
        %v1698 = vpop.f32.mrb[0].mxu0
        %1699 = vmatprep.mubr.bf16.mxu0 0
        %1700 = vmatmul.mubr.bf16.gmra.mrb[0].mxu0 %v447
        %v1701 = vpop.f32.mrb[0].mxu0
        %v1702 = vadd.f32 0.0, %v1701
        %v1703 = vpop.f32.mrb[0].mxu0
        %v1704 = vpop.f32.mrb[0].mxu0
        %v1705 = vadd.f32 0.0, %v1704
        %v1706 = vpop.f32.mrb[0].mxu0
        %1707 = vmatprep.mubr.bf16.mxu0 0
        %1708 = vmatmul.mubr.bf16.gmra.mrb[0].mxu0 %v450
        %v1709 = vpop.f32.mrb[0].mxu0
        %v1710 = vadd.f32 0.0, %v1709
        %v1711 = vpop.f32.mrb[0].mxu0
        %v1712 = vpop.f32.mrb[0].mxu0
        %v1713 = vadd.f32 0.0, %v1712
        %v1714 = vpop.f32.mrb[0].mxu0
        %1715 = vdwg.mxu0
        %v1780 = vunpack.c.l.b16 %v1475
        %v1781 = vunpack.c.h.b16 %v1475
        %v1782 = vunpack.c.l.b16 %v1476
        %v1783 = vunpack.c.h.b16 %v1476
        %v1784 = vunpack.c.l.b16 %v1477
        %v1785 = vunpack.c.h.b16 %v1477
        %v1786 = vunpack.c.l.b16 %v1478
        %v1787 = vunpack.c.h.b16 %v1478
        %v1788 = vunpack.c.l.b16 %v1479
        %v1789 = vunpack.c.h.b16 %v1479
        %v1790 = vunpack.c.l.b16 %v1480
        %v1791 = vunpack.c.h.b16 %v1480
        %v1792 = vunpack.c.l.b16 %v1481
        %v1793 = vunpack.c.h.b16 %v1481
        %v1794 = vunpack.c.l.b16 %v1482
        %v1795 = vunpack.c.h.b16 %v1482
        %v1796 = vunpack.c.l.b16 %v1483
        %v1797 = vunpack.c.h.b16 %v1483
        %v1798 = vunpack.c.l.b16 %v1484
        %v1799 = vunpack.c.h.b16 %v1484
        %v1800 = vunpack.c.l.b16 %v1485
        %v1801 = vunpack.c.h.b16 %v1485
        %v1802 = vunpack.c.l.b16 %v1486
        %v1803 = vunpack.c.h.b16 %v1486
        %v1804 = vunpack.c.l.b16 %v1487
        %v1805 = vunpack.c.h.b16 %v1487
        %v1806 = vunpack.c.l.b16 %v1488
        %v1807 = vunpack.c.h.b16 %v1488
        %v1808 = vunpack.c.l.b16 %v1489
        %v1809 = vunpack.c.h.b16 %v1489
        %v1810 = vunpack.c.l.b16 %v1490
        %v1811 = vunpack.c.h.b16 %v1490
        %v1812 = vunpack.c.l.b16 %v1491
        %v1813 = vunpack.c.h.b16 %v1491
        %v1814 = vunpack.c.l.b16 %v1492
        %v1815 = vunpack.c.h.b16 %v1492
        %v1816 = vunpack.c.l.b16 %v1493
        %v1817 = vunpack.c.h.b16 %v1493
        %v1818 = vunpack.c.l.b16 %v1494
        %v1819 = vunpack.c.h.b16 %v1494
        %v1820 = vunpack.c.l.b16 %v1495
        %v1821 = vunpack.c.h.b16 %v1495
        %v1822 = vunpack.c.l.b16 %v1496
        %v1823 = vunpack.c.h.b16 %v1496
        %v1824 = vunpack.c.l.b16 %v1497
        %v1825 = vunpack.c.h.b16 %v1497
        %v1826 = vunpack.c.l.b16 %v1498
        %v1827 = vunpack.c.h.b16 %v1498
        %v1828 = vunpack.c.l.b16 %v1499
        %v1829 = vunpack.c.h.b16 %v1499
        %v1830 = vunpack.c.l.b16 %v1500
        %v1831 = vunpack.c.h.b16 %v1500
        %v1832 = vunpack.c.l.b16 %v1501
        %v1833 = vunpack.c.h.b16 %v1501
        %v1834 = vunpack.c.l.b16 %v1502
        %v1835 = vunpack.c.h.b16 %v1502
        %v1836 = vunpack.c.l.b16 %v1503
        %v1837 = vunpack.c.h.b16 %v1503
        %v1838 = vunpack.c.l.b16 %v1504
        %v1839 = vunpack.c.h.b16 %v1504
        %v1840 = vunpack.c.l.b16 %v1505
        %v1841 = vunpack.c.h.b16 %v1505
        %v1842 = vunpack.c.l.b16 %v1506
        %v1843 = vunpack.c.h.b16 %v1506
        %v1844 = vunpack.c.l.b16 %v1507
        %v1845 = vunpack.c.h.b16 %v1507
        %v1846 = vunpack.c.l.b16 %v1508
        %v1847 = vunpack.c.h.b16 %v1508
        %v1848 = vunpack.c.l.b16 %v1509
        %v1849 = vunpack.c.h.b16 %v1509
        %v1850 = vunpack.c.l.b16 %v1510
        %v1851 = vunpack.c.h.b16 %v1510
        %v1852 = vunpack.c.l.b16 %v1511
        %v1853 = vunpack.c.h.b16 %v1511
        %v1854 = vunpack.c.l.b16 %v1512
        %v1855 = vunpack.c.h.b16 %v1512
        %v1856 = vunpack.c.l.b16 %v1513
        %v1857 = vunpack.c.h.b16 %v1513
        %v1858 = vunpack.c.l.b16 %v1514
        %v1859 = vunpack.c.h.b16 %v1514
        %v1860 = vunpack.c.l.b16 %v1515
        %v1861 = vunpack.c.h.b16 %v1515
        %v1862 = vunpack.c.l.b16 %v1516
        %v1863 = vunpack.c.h.b16 %v1516
        %v1864 = vunpack.c.l.b16 %v1517
        %v1865 = vunpack.c.h.b16 %v1517
        %v1866 = vunpack.c.l.b16 %v1518
        %v1867 = vunpack.c.h.b16 %v1518
        %v1868 = vunpack.c.l.b16 %v1519
        %v1869 = vunpack.c.h.b16 %v1519
        %v1870 = vunpack.c.l.b16 %v1520
        %v1871 = vunpack.c.h.b16 %v1520
        %v1872 = vunpack.c.l.b16 %v1521
        %v1873 = vunpack.c.h.b16 %v1521
        %v1874 = vunpack.c.l.b16 %v1522
        %v1875 = vunpack.c.h.b16 %v1522
        %v1876 = vunpack.c.l.b16 %v1523
        %v1877 = vunpack.c.h.b16 %v1523
        %v1878 = vunpack.c.l.b16 %v1524
        %v1879 = vunpack.c.h.b16 %v1524
        %v1880 = vunpack.c.l.b16 %v1525
        %v1881 = vunpack.c.h.b16 %v1525
        %v1882 = vunpack.c.l.b16 %v1526
        %v1883 = vunpack.c.h.b16 %v1526
        %v1884 = vunpack.c.l.b16 %v1527
        %v1885 = vunpack.c.h.b16 %v1527
        %v1886 = vunpack.c.l.b16 %v1528
        %v1887 = vunpack.c.h.b16 %v1528
        %v1888 = vunpack.c.l.b16 %v1529
        %v1889 = vunpack.c.h.b16 %v1529
        %v1890 = vunpack.c.l.b16 %v1530
        %v1891 = vunpack.c.h.b16 %v1530
        %v1892 = vunpack.c.l.b16 %v1531
        %v1893 = vunpack.c.h.b16 %v1531
        %v1894 = vunpack.c.l.b16 %v1532
        %v1895 = vunpack.c.h.b16 %v1532
        %v1896 = vunpack.c.l.b16 %v1533
        %v1897 = vunpack.c.h.b16 %v1533
        %v1898 = vunpack.c.l.b16 %v1534
        %v1899 = vunpack.c.h.b16 %v1534
        %v1900 = vunpack.c.l.b16 %v1535
        %v1901 = vunpack.c.h.b16 %v1535
        %v1902 = vunpack.c.l.b16 %v1536
        %v1903 = vunpack.c.h.b16 %v1536
        %v1904 = vunpack.c.l.b16 %v1537
        %v1905 = vunpack.c.h.b16 %v1537
        %v1906 = vunpack.c.l.b16 %v1538
        %v1907 = vunpack.c.h.b16 %v1538
        %v1908 = vpack.c.b16 %v1788, %v1780
        %v1909 = vpack.c.b16 %v1789, %v1781
        %v1910 = vpack.c.b16 %v1790, %v1782
        %v1911 = vpack.c.b16 %v1791, %v1783
        %v1912 = vpack.c.b16 %v1792, %v1784
        %v1913 = vpack.c.b16 %v1793, %v1785
        %v1914 = vpack.c.b16 %v1794, %v1786
        %v1915 = vpack.c.b16 %v1795, %v1787
        %v1916 = vpack.c.b16 %v1804, %v1796
        %v1917 = vpack.c.b16 %v1805, %v1797
        %v1918 = vpack.c.b16 %v1806, %v1798
        %v1919 = vpack.c.b16 %v1807, %v1799
        %v1920 = vpack.c.b16 %v1808, %v1800
        %v1921 = vpack.c.b16 %v1809, %v1801
        %v1922 = vpack.c.b16 %v1810, %v1802
        %v1923 = vpack.c.b16 %v1811, %v1803
        %v1924 = vpack.c.b16 %v1820, %v1812
        %v1925 = vpack.c.b16 %v1821, %v1813
        %v1926 = vpack.c.b16 %v1822, %v1814
        %v1927 = vpack.c.b16 %v1823, %v1815
        %v1928 = vpack.c.b16 %v1824, %v1816
        %v1929 = vpack.c.b16 %v1825, %v1817
        %v1930 = vpack.c.b16 %v1826, %v1818
        %v1931 = vpack.c.b16 %v1827, %v1819
        %v1932 = vpack.c.b16 %v1836, %v1828
        %v1933 = vpack.c.b16 %v1837, %v1829
        %v1934 = vpack.c.b16 %v1838, %v1830
        %v1935 = vpack.c.b16 %v1839, %v1831
        %v1936 = vpack.c.b16 %v1840, %v1832
        %v1937 = vpack.c.b16 %v1841, %v1833
        %v1938 = vpack.c.b16 %v1842, %v1834
        %v1939 = vpack.c.b16 %v1843, %v1835
        %v1940 = vpack.c.b16 %v1852, %v1844
        %v1941 = vpack.c.b16 %v1853, %v1845
        %v1942 = vpack.c.b16 %v1854, %v1846
        %v1943 = vpack.c.b16 %v1855, %v1847
        %v1944 = vpack.c.b16 %v1856, %v1848
        %v1945 = vpack.c.b16 %v1857, %v1849
        %v1946 = vpack.c.b16 %v1858, %v1850
        %v1947 = vpack.c.b16 %v1859, %v1851
        %v1948 = vpack.c.b16 %v1868, %v1860
        %v1949 = vpack.c.b16 %v1869, %v1861
        %v1950 = vpack.c.b16 %v1870, %v1862
        %v1951 = vpack.c.b16 %v1871, %v1863
        %v1952 = vpack.c.b16 %v1872, %v1864
        %v1953 = vpack.c.b16 %v1873, %v1865
        %v1954 = vpack.c.b16 %v1874, %v1866
        %v1955 = vpack.c.b16 %v1875, %v1867
        %v1956 = vpack.c.b16 %v1884, %v1876
        %v1957 = vpack.c.b16 %v1885, %v1877
        %v1958 = vpack.c.b16 %v1886, %v1878
        %v1959 = vpack.c.b16 %v1887, %v1879
        %v1960 = vpack.c.b16 %v1888, %v1880
        %v1961 = vpack.c.b16 %v1889, %v1881
        %v1962 = vpack.c.b16 %v1890, %v1882
        %v1963 = vpack.c.b16 %v1891, %v1883
        %v1964 = vpack.c.b16 %v1900, %v1892
        %v1965 = vpack.c.b16 %v1901, %v1893
        %v1966 = vpack.c.b16 %v1902, %v1894
        %v1967 = vpack.c.b16 %v1903, %v1895
        %v1968 = vpack.c.b16 %v1904, %v1896
        %v1969 = vpack.c.b16 %v1905, %v1897
        %v1970 = vpack.c.b16 %v1906, %v1898
        %v1971 = vpack.c.b16 %v1907, %v1899
        %2036 = vmatprep.subr.bf16.mxu0 0
        %2037 = vmatpush1.bf16.msra.mxu0 %v1539
        %2038 = vmatprep.subr.bf16.mxu0 0
        %2039 = vmatpush1.bf16.msra.mxu0 %v1540
        %2040 = vmatprep.subr.bf16.mxu0 0
        %2041 = vmatpush1.bf16.msra.mxu0 %v1541
        %2042 = vmatprep.subr.bf16.mxu0 0
        %2043 = vmatpush1.bf16.msra.mxu0 %v1542
        %2044 = vmatprep.subr.bf16.mxu0 0
        %2045 = vmatpush1.bf16.msra.mxu0 %v1543
        %2046 = vmatprep.subr.bf16.mxu0 0
        %2047 = vmatpush1.bf16.msra.mxu0 %v1544
        %2048 = vmatprep.subr.bf16.mxu0 0
        %2049 = vmatpush1.bf16.msra.mxu0 %v1545
        %2050 = vmatprep.subr.bf16.mxu0 0
        %2051 = vmatpush1.bf16.msra.mxu0 %v1546
        %2052 = vmatprep.subr.bf16.mxu0 0
        %2053 = vmatpush1.bf16.msra.mxu0 %v1547
        %2054 = vmatprep.subr.bf16.mxu0 0
        %2055 = vmatpush1.bf16.msra.mxu0 %v1548
        %2056 = vmatprep.subr.bf16.mxu0 0
        %2057 = vmatpush1.bf16.msra.mxu0 %v1549
        %2058 = vmatprep.subr.bf16.mxu0 0
        %2059 = vmatpush1.bf16.msra.mxu0 %v1550
        %2060 = vmatprep.subr.bf16.mxu0 0
        %2061 = vmatpush1.bf16.msra.mxu0 %v1551
        %2062 = vmatprep.subr.bf16.mxu0 0
        %2063 = vmatpush1.bf16.msra.mxu0 %v1552
        %2064 = vmatprep.subr.bf16.mxu0 0
        %2065 = vmatpush1.bf16.msra.mxu0 %v1553
        %2066 = vmatprep.subr.bf16.mxu0 0
        %2067 = vmatpush1.bf16.msra.mxu0 %v1554
        %2068 = vmatprep.mubr.bf16.mxu0 %v1909
        %2069 = vmatmul.mubr.bf16.gmra.mrb[0].mxu0 %v1908
        %v2070 = vpop.f32.mrb[0].mxu0
        %v2071 = vadd.f32 %v1654, %v2070
        %v2072 = vpop.f32.mrb[0].mxu0
        %v2073 = vpop.f32.mrb[0].mxu0
        %v2074 = vadd.f32 %v1657, %v2073
        %v2075 = vpop.f32.mrb[0].mxu0
        %2076 = vmatprep.mubr.bf16.mxu0 %v1917
        %2077 = vmatmul.mubr.bf16.gmra.mrb[0].mxu0 %v1916
        %v2078 = vpop.f32.mrb[0].mxu0
        %v2079 = vadd.f32 %v1662, %v2078
        %v2080 = vpop.f32.mrb[0].mxu0
        %v2081 = vpop.f32.mrb[0].mxu0
        %v2082 = vadd.f32 %v1665, %v2081
        %v2083 = vpop.f32.mrb[0].mxu0
        %2084 = vmatprep.mubr.bf16.mxu0 %v1925
        %2085 = vmatmul.mubr.bf16.gmra.mrb[0].mxu0 %v1924
        %v2086 = vpop.f32.mrb[0].mxu0
        %v2087 = vadd.f32 %v1670, %v2086
        %v2088 = vpop.f32.mrb[0].mxu0
        %v2089 = vpop.f32.mrb[0].mxu0
        %v2090 = vadd.f32 %v1673, %v2089
        %v2091 = vpop.f32.mrb[0].mxu0
        %2092 = vmatprep.mubr.bf16.mxu0 %v1933
        %2093 = vmatmul.mubr.bf16.gmra.mrb[0].mxu0 %v1932
        %v2094 = vpop.f32.mrb[0].mxu0
        %v2095 = vadd.f32 %v1678, %v2094
        %v2096 = vpop.f32.mrb[0].mxu0
        %v2097 = vpop.f32.mrb[0].mxu0
        %v2098 = vadd.f32 %v1681, %v2097
        %v2099 = vpop.f32.mrb[0].mxu0
        %2100 = vmatprep.mubr.bf16.mxu0 %v1941
        %2101 = vmatmul.mubr.bf16.gmra.mrb[0].mxu0 %v1940
        %v2102 = vpop.f32.mrb[0].mxu0
        %v2103 = vadd.f32 %v1686, %v2102
        %v2104 = vpop.f32.mrb[0].mxu0
        %v2105 = vpop.f32.mrb[0].mxu0
        %v2106 = vadd.f32 %v1689, %v2105
        %v2107 = vpop.f32.mrb[0].mxu0
        %2108 = vmatprep.mubr.bf16.mxu0 %v1949
        %2109 = vmatmul.mubr.bf16.gmra.mrb[0].mxu0 %v1948
        %v2110 = vpop.f32.mrb[0].mxu0
        %v2111 = vadd.f32 %v1694, %v2110
        %v2112 = vpop.f32.mrb[0].mxu0
        %v2113 = vpop.f32.mrb[0].mxu0
        %v2114 = vadd.f32 %v1697, %v2113
        %v2115 = vpop.f32.mrb[0].mxu0
        %2116 = vmatprep.mubr.bf16.mxu0 %v1957
        %2117 = vmatmul.mubr.bf16.gmra.mrb[0].mxu0 %v1956
        %v2118 = vpop.f32.mrb[0].mxu0
        %v2119 = vadd.f32 %v1702, %v2118
        %v2120 = vpop.f32.mrb[0].mxu0
        %v2121 = vpop.f32.mrb[0].mxu0
        %v2122 = vadd.f32 %v1705, %v2121
        %v2123 = vpop.f32.mrb[0].mxu0
        %2124 = vmatprep.mubr.bf16.mxu0 %v1965
        %2125 = vmatmul.mubr.bf16.gmra.mrb[0].mxu0 %v1964
        %v2126 = vpop.f32.mrb[0].mxu0
        %v2127 = vadd.f32 %v1710, %v2126
        %v2128 = vpop.f32.mrb[0].mxu0
        %v2129 = vpop.f32.mrb[0].mxu0
        %v2130 = vadd.f32 %v1713, %v2129
        %v2131 = vpop.f32.mrb[0].mxu0
        %2132 = vdwg.mxu0
        %2133 = vmatprep.subr.bf16.mxu0 0
        %2134 = vmatpush1.bf16.msra.mxu0 %v1555
        %2135 = vmatprep.subr.bf16.mxu0 0
        %2136 = vmatpush1.bf16.msra.mxu0 %v1556
        %2137 = vmatprep.subr.bf16.mxu0 0
        %2138 = vmatpush1.bf16.msra.mxu0 %v1557
        %2139 = vmatprep.subr.bf16.mxu0 0
        %2140 = vmatpush1.bf16.msra.mxu0 %v1558
        %2141 = vmatprep.subr.bf16.mxu0 0
        %2142 = vmatpush1.bf16.msra.mxu0 %v1559
        %2143 = vmatprep.subr.bf16.mxu0 0
        %2144 = vmatpush1.bf16.msra.mxu0 %v1560
        %2145 = vmatprep.subr.bf16.mxu0 0
        %2146 = vmatpush1.bf16.msra.mxu0 %v1561
        %2147 = vmatprep.subr.bf16.mxu0 0
        %2148 = vmatpush1.bf16.msra.mxu0 %v1562
        %2149 = vmatprep.subr.bf16.mxu0 0
        %2150 = vmatpush1.bf16.msra.mxu0 %v1563
        %2151 = vmatprep.subr.bf16.mxu0 0
        %2152 = vmatpush1.bf16.msra.mxu0 %v1564
        %2153 = vmatprep.subr.bf16.mxu0 0
        %2154 = vmatpush1.bf16.msra.mxu0 %v1565
        %2155 = vmatprep.subr.bf16.mxu0 0
        %2156 = vmatpush1.bf16.msra.mxu0 %v1566
        %2157 = vmatprep.subr.bf16.mxu0 0
        %2158 = vmatpush1.bf16.msra.mxu0 %v1567
        %2159 = vmatprep.subr.bf16.mxu0 0
        %2160 = vmatpush1.bf16.msra.mxu0 %v1568
        %2161 = vmatprep.subr.bf16.mxu0 0
        %2162 = vmatpush1.bf16.msra.mxu0 %v1569
        %2163 = vmatprep.subr.bf16.mxu0 0
        %2164 = vmatpush1.bf16.msra.mxu0 %v1570
        %2165 = vmatprep.mubr.bf16.mxu0 %v1911
        %2166 = vmatmul.mubr.bf16.gmra.mrb[0].mxu0 %v1910
        %v2167 = vpop.f32.mrb[0].mxu0
        %v2168 = vadd.f32 %v2071, %v2167
        %v2169 = vpop.f32.mrb[0].mxu0
        %v2170 = vpop.f32.mrb[0].mxu0
        %v2171 = vadd.f32 %v2074, %v2170
        %v2172 = vpop.f32.mrb[0].mxu0
        %2173 = vmatprep.mubr.bf16.mxu0 %v1919
        %2174 = vmatmul.mubr.bf16.gmra.mrb[0].mxu0 %v1918
        %v2175 = vpop.f32.mrb[0].mxu0
        %v2176 = vadd.f32 %v2079, %v2175
        %v2177 = vpop.f32.mrb[0].mxu0
        %v2178 = vpop.f32.mrb[0].mxu0
        %v2179 = vadd.f32 %v2082, %v2178
        %v2180 = vpop.f32.mrb[0].mxu0
        %2181 = vmatprep.mubr.bf16.mxu0 %v1927
        %2182 = vmatmul.mubr.bf16.gmra.mrb[0].mxu0 %v1926
        %v2183 = vpop.f32.mrb[0].mxu0
        %v2184 = vadd.f32 %v2087, %v2183
        %v2185 = vpop.f32.mrb[0].mxu0
        %v2186 = vpop.f32.mrb[0].mxu0
        %v2187 = vadd.f32 %v2090, %v2186
        %v2188 = vpop.f32.mrb[0].mxu0
        %2189 = vmatprep.mubr.bf16.mxu0 %v1935
        %2190 = vmatmul.mubr.bf16.gmra.mrb[0].mxu0 %v1934
        %v2191 = vpop.f32.mrb[0].mxu0
        %v2192 = vadd.f32 %v2095, %v2191
        %v2193 = vpop.f32.mrb[0].mxu0
        %v2194 = vpop.f32.mrb[0].mxu0
        %v2195 = vadd.f32 %v2098, %v2194
        %v2196 = vpop.f32.mrb[0].mxu0
        %2197 = vmatprep.mubr.bf16.mxu0 %v1943
        %2198 = vmatmul.mubr.bf16.gmra.mrb[0].mxu0 %v1942
        %v2199 = vpop.f32.mrb[0].mxu0
        %v2200 = vadd.f32 %v2103, %v2199
        %v2201 = vpop.f32.mrb[0].mxu0
        %v2202 = vpop.f32.mrb[0].mxu0
        %v2203 = vadd.f32 %v2106, %v2202
        %v2204 = vpop.f32.mrb[0].mxu0
        %2205 = vmatprep.mubr.bf16.mxu0 %v1951
        %2206 = vmatmul.mubr.bf16.gmra.mrb[0].mxu0 %v1950
        %v2207 = vpop.f32.mrb[0].mxu0
        %v2208 = vadd.f32 %v2111, %v2207
        %v2209 = vpop.f32.mrb[0].mxu0
        %v2210 = vpop.f32.mrb[0].mxu0
        %v2211 = vadd.f32 %v2114, %v2210
        %v2212 = vpop.f32.mrb[0].mxu0
        %2213 = vmatprep.mubr.bf16.mxu0 %v1959
        %2214 = vmatmul.mubr.bf16.gmra.mrb[0].mxu0 %v1958
        %v2215 = vpop.f32.mrb[0].mxu0
        %v2216 = vadd.f32 %v2119, %v2215
        %v2217 = vpop.f32.mrb[0].mxu0
        %v2218 = vpop.f32.mrb[0].mxu0
        %v2219 = vadd.f32 %v2122, %v2218
        %v2220 = vpop.f32.mrb[0].mxu0
        %2221 = vmatprep.mubr.bf16.mxu0 %v1967
        %2222 = vmatmul.mubr.bf16.gmra.mrb[0].mxu0 %v1966
        %v2223 = vpop.f32.mrb[0].mxu0
        %v2224 = vadd.f32 %v2127, %v2223
        %v2225 = vpop.f32.mrb[0].mxu0
        %v2226 = vpop.f32.mrb[0].mxu0
        %v2227 = vadd.f32 %v2130, %v2226
        %v2228 = vpop.f32.mrb[0].mxu0
        %2229 = vdwg.mxu0
        %2230 = vmatprep.subr.bf16.mxu0 0
        %2231 = vmatpush1.bf16.msra.mxu0 %v1571
        %2232 = vmatprep.subr.bf16.mxu0 0
        %2233 = vmatpush1.bf16.msra.mxu0 %v1572
        %2234 = vmatprep.subr.bf16.mxu0 0
        %2235 = vmatpush1.bf16.msra.mxu0 %v1573
        %2236 = vmatprep.subr.bf16.mxu0 0
        %2237 = vmatpush1.bf16.msra.mxu0 %v1574
        %2238 = vmatprep.subr.bf16.mxu0 0
        %2239 = vmatpush1.bf16.msra.mxu0 %v1575
        %2240 = vmatprep.subr.bf16.mxu0 0
        %2241 = vmatpush1.bf16.msra.mxu0 %v1576
        %2242 = vmatprep.subr.bf16.mxu0 0
        %2243 = vmatpush1.bf16.msra.mxu0 %v1577
        %2244 = vmatprep.subr.bf16.mxu0 0
        %2245 = vmatpush1.bf16.msra.mxu0 %v1578
        %2246 = vmatprep.subr.bf16.mxu0 0
        %2247 = vmatpush1.bf16.msra.mxu0 %v1579
        %2248 = vmatprep.subr.bf16.mxu0 0
        %2249 = vmatpush1.bf16.msra.mxu0 %v1580
        %2250 = vmatprep.subr.bf16.mxu0 0
        %2251 = vmatpush1.bf16.msra.mxu0 %v1581
        %2252 = vmatprep.subr.bf16.mxu0 0
        %2253 = vmatpush1.bf16.msra.mxu0 %v1582
        %2254 = vmatprep.subr.bf16.mxu0 0
        %2255 = vmatpush1.bf16.msra.mxu0 %v1583
        %2256 = vmatprep.subr.bf16.mxu0 0
        %2257 = vmatpush1.bf16.msra.mxu0 %v1584
        %2258 = vmatprep.subr.bf16.mxu0 0
        %2259 = vmatpush1.bf16.msra.mxu0 %v1585
        %2260 = vmatprep.subr.bf16.mxu0 0
        %2261 = vmatpush1.bf16.msra.mxu0 %v1586
        %2262 = vmatprep.mubr.bf16.mxu0 %v1913
        %2263 = vmatmul.mubr.bf16.gmra.mrb[0].mxu0 %v1912
        %v2264 = vpop.f32.mrb[0].mxu0
        %v2265 = vadd.f32 %v2168, %v2264
        %v2266 = vpop.f32.mrb[0].mxu0
        %v2267 = vpop.f32.mrb[0].mxu0
        %v2268 = vadd.f32 %v2171, %v2267
        %v2269 = vpop.f32.mrb[0].mxu0
        %2270 = vmatprep.mubr.bf16.mxu0 %v1921
        %2271 = vmatmul.mubr.bf16.gmra.mrb[0].mxu0 %v1920
        %v2272 = vpop.f32.mrb[0].mxu0
        %v2273 = vadd.f32 %v2176, %v2272
        %v2274 = vpop.f32.mrb[0].mxu0
        %v2275 = vpop.f32.mrb[0].mxu0
        %v2276 = vadd.f32 %v2179, %v2275
        %v2277 = vpop.f32.mrb[0].mxu0
        %2278 = vmatprep.mubr.bf16.mxu0 %v1929
        %2279 = vmatmul.mubr.bf16.gmra.mrb[0].mxu0 %v1928
        %v2280 = vpop.f32.mrb[0].mxu0
        %v2281 = vadd.f32 %v2184, %v2280
        %v2282 = vpop.f32.mrb[0].mxu0
        %v2283 = vpop.f32.mrb[0].mxu0
        %v2284 = vadd.f32 %v2187, %v2283
        %v2285 = vpop.f32.mrb[0].mxu0
        %2286 = vmatprep.mubr.bf16.mxu0 %v1937
        %2287 = vmatmul.mubr.bf16.gmra.mrb[0].mxu0 %v1936
        %v2288 = vpop.f32.mrb[0].mxu0
        %v2289 = vadd.f32 %v2192, %v2288
        %v2290 = vpop.f32.mrb[0].mxu0
        %v2291 = vpop.f32.mrb[0].mxu0
        %v2292 = vadd.f32 %v2195, %v2291
        %v2293 = vpop.f32.mrb[0].mxu0
        %2294 = vmatprep.mubr.bf16.mxu0 %v1945
        %2295 = vmatmul.mubr.bf16.gmra.mrb[0].mxu0 %v1944
        %v2296 = vpop.f32.mrb[0].mxu0
        %v2297 = vadd.f32 %v2200, %v2296
        %v2298 = vpop.f32.mrb[0].mxu0
        %v2299 = vpop.f32.mrb[0].mxu0
        %v2300 = vadd.f32 %v2203, %v2299
        %v2301 = vpop.f32.mrb[0].mxu0
        %2302 = vmatprep.mubr.bf16.mxu0 %v1953
        %2303 = vmatmul.mubr.bf16.gmra.mrb[0].mxu0 %v1952
        %v2304 = vpop.f32.mrb[0].mxu0
        %v2305 = vadd.f32 %v2208, %v2304
        %v2306 = vpop.f32.mrb[0].mxu0
        %v2307 = vpop.f32.mrb[0].mxu0
        %v2308 = vadd.f32 %v2211, %v2307
        %v2309 = vpop.f32.mrb[0].mxu0
        %2310 = vmatprep.mubr.bf16.mxu0 %v1961
        %2311 = vmatmul.mubr.bf16.gmra.mrb[0].mxu0 %v1960
        %v2312 = vpop.f32.mrb[0].mxu0
        %v2313 = vadd.f32 %v2216, %v2312
        %v2314 = vpop.f32.mrb[0].mxu0
        %v2315 = vpop.f32.mrb[0].mxu0
        %v2316 = vadd.f32 %v2219, %v2315
        %v2317 = vpop.f32.mrb[0].mxu0
        %2318 = vmatprep.mubr.bf16.mxu0 %v1969
        %2319 = vmatmul.mubr.bf16.gmra.mrb[0].mxu0 %v1968
        %v2320 = vpop.f32.mrb[0].mxu0
        %v2321 = vadd.f32 %v2224, %v2320
        %v2322 = vpop.f32.mrb[0].mxu0
        %v2323 = vpop.f32.mrb[0].mxu0
        %v2324 = vadd.f32 %v2227, %v2323
        %v2325 = vpop.f32.mrb[0].mxu0
        %2326 = vdwg.mxu0
        %2327 = vmatprep.subr.bf16.mxu0 0
        %2328 = vmatpush1.bf16.msra.mxu0 %v1587
        %2329 = vmatprep.subr.bf16.mxu0 0
        %2330 = vmatpush1.bf16.msra.mxu0 %v1588
        %2331 = vmatprep.subr.bf16.mxu0 0
        %2332 = vmatpush1.bf16.msra.mxu0 %v1589
        %2333 = vmatprep.subr.bf16.mxu0 0
        %2334 = vmatpush1.bf16.msra.mxu0 %v1590
        %2335 = vmatprep.subr.bf16.mxu0 0
        %2336 = vmatpush1.bf16.msra.mxu0 %v1591
        %2337 = vmatprep.subr.bf16.mxu0 0
        %2338 = vmatpush1.bf16.msra.mxu0 %v1592
        %2339 = vmatprep.subr.bf16.mxu0 0
        %2340 = vmatpush1.bf16.msra.mxu0 %v1593
        %2341 = vmatprep.subr.bf16.mxu0 0
        %2342 = vmatpush1.bf16.msra.mxu0 %v1594
        %2343 = vmatprep.subr.bf16.mxu0 0
        %2344 = vmatpush1.bf16.msra.mxu0 %v1595
        %2345 = vmatprep.subr.bf16.mxu0 0
        %2346 = vmatpush1.bf16.msra.mxu0 %v1596
        %2347 = vmatprep.subr.bf16.mxu0 0
        %2348 = vmatpush1.bf16.msra.mxu0 %v1597
        %2349 = vmatprep.subr.bf16.mxu0 0
        %2350 = vmatpush1.bf16.msra.mxu0 %v1598
        %2351 = vmatprep.subr.bf16.mxu0 0
        %2352 = vmatpush1.bf16.msra.mxu0 %v1599
        %2353 = vmatprep.subr.bf16.mxu0 0
        %2354 = vmatpush1.bf16.msra.mxu0 %v1600
        %2355 = vmatprep.subr.bf16.mxu0 0
        %2356 = vmatpush1.bf16.msra.mxu0 %v1601
        %2357 = vmatprep.subr.bf16.mxu0 0
        %2358 = vmatpush1.bf16.msra.mxu0 %v1602
        %2359 = vmatprep.mubr.bf16.mxu0 %v1915
        %2360 = vmatmul.mubr.bf16.gmra.mrb[0].mxu0 %v1914
        %v2361 = vpop.f32.mrb[0].mxu0
        %v2362 = vadd.f32 %v2265, %v2361
        %v2363 = vpop.f32.mrb[0].mxu0
        %v2364 = vpop.f32.mrb[0].mxu0
        %v2365 = vadd.f32 %v2268, %v2364
        %v2366 = vpop.f32.mrb[0].mxu0
        %2367 = vmatprep.mubr.bf16.mxu0 %v1923
        %2368 = vmatmul.mubr.bf16.gmra.mrb[0].mxu0 %v1922
        %v2369 = vpop.f32.mrb[0].mxu0
        %v2370 = vadd.f32 %v2273, %v2369
        %v2371 = vpop.f32.mrb[0].mxu0
        %v2372 = vpop.f32.mrb[0].mxu0
        %v2373 = vadd.f32 %v2276, %v2372
        %v2374 = vpop.f32.mrb[0].mxu0
        %2375 = vmatprep.mubr.bf16.mxu0 %v1931
        %2376 = vmatmul.mubr.bf16.gmra.mrb[0].mxu0 %v1930
        %v2377 = vpop.f32.mrb[0].mxu0
        %v2378 = vadd.f32 %v2281, %v2377
        %v2379 = vpop.f32.mrb[0].mxu0
        %v2380 = vpop.f32.mrb[0].mxu0
        %v2381 = vadd.f32 %v2284, %v2380
        %v2382 = vpop.f32.mrb[0].mxu0
        %2383 = vmatprep.mubr.bf16.mxu0 %v1939
        %2384 = vmatmul.mubr.bf16.gmra.mrb[0].mxu0 %v1938
        %v2385 = vpop.f32.mrb[0].mxu0
        %v2386 = vadd.f32 %v2289, %v2385
        %v2387 = vpop.f32.mrb[0].mxu0
        %v2388 = vpop.f32.mrb[0].mxu0
        %v2389 = vadd.f32 %v2292, %v2388
        %v2390 = vpop.f32.mrb[0].mxu0
        %2391 = vmatprep.mubr.bf16.mxu0 %v1947
        %2392 = vmatmul.mubr.bf16.gmra.mrb[0].mxu0 %v1946
        %v2393 = vpop.f32.mrb[0].mxu0
        %v2394 = vadd.f32 %v2297, %v2393
        %v2395 = vpop.f32.mrb[0].mxu0
        %v2396 = vpop.f32.mrb[0].mxu0
        %v2397 = vadd.f32 %v2300, %v2396
        %v2398 = vpop.f32.mrb[0].mxu0
        %2399 = vmatprep.mubr.bf16.mxu0 %v1955
        %2400 = vmatmul.mubr.bf16.gmra.mrb[0].mxu0 %v1954
        %v2401 = vpop.f32.mrb[0].mxu0
        %v2402 = vadd.f32 %v2305, %v2401
        %v2403 = vpop.f32.mrb[0].mxu0
        %v2404 = vpop.f32.mrb[0].mxu0
        %v2405 = vadd.f32 %v2308, %v2404
        %v2406 = vpop.f32.mrb[0].mxu0
        %2407 = vmatprep.mubr.bf16.mxu0 %v1963
        %2408 = vmatmul.mubr.bf16.gmra.mrb[0].mxu0 %v1962
        %v2409 = vpop.f32.mrb[0].mxu0
        %v2410 = vadd.f32 %v2313, %v2409
        %v2411 = vpop.f32.mrb[0].mxu0
        %v2412 = vpop.f32.mrb[0].mxu0
        %v2413 = vadd.f32 %v2316, %v2412
        %v2414 = vpop.f32.mrb[0].mxu0
        %2415 = vmatprep.mubr.bf16.mxu0 %v1971
        %2416 = vmatmul.mubr.bf16.gmra.mrb[0].mxu0 %v1970
        %v2417 = vpop.f32.mrb[0].mxu0
        %v2418 = vadd.f32 %v2321, %v2417
        %v2419 = vpop.f32.mrb[0].mxu0
        %v2420 = vpop.f32.mrb[0].mxu0
        %v2421 = vadd.f32 %v2324, %v2420
        %v2422 = vpop.f32.mrb[0].mxu0
        %2423 = vdwg.mxu0
        %v2424 = vld [vmem:[%s348] sm:$0x1]
        %v2426 = vlaneseq
        %v2427 = vshrl.u32 %v2426, 7
        %v2428 = vsub.s32 0, %v2427
        %v2429 = vrot.slane %v2424, %v2428
        %v2431 = vadd.f32 %v2362, %v2429
        %v2432 = vadd.f32 %v2365, %v2429
        %v2433 = vadd.f32 %v2370, %v2429
        %v2434 = vadd.f32 %v2373, %v2429
        %v2435 = vadd.f32 %v2378, %v2429
        %v2436 = vadd.f32 %v2381, %v2429
        %v2437 = vadd.f32 %v2386, %v2429
        %v2438 = vadd.f32 %v2389, %v2429
        %v2439 = vadd.f32 %v2394, %v2429
        %v2440 = vadd.f32 %v2397, %v2429
        %v2441 = vadd.f32 %v2402, %v2429
        %v2442 = vadd.f32 %v2405, %v2429
        %v2443 = vadd.f32 %v2410, %v2429
        %v2444 = vadd.f32 %v2413, %v2429
        %v2445 = vadd.f32 %v2418, %v2429
        %v2446 = vadd.f32 %v2421, %v2429
        %p2447 = scmp.lt.s32.totalorder %s30, 3
        // Predicated region
        $region53: #{tpu_custom_call.1} parent=39 // pred_check
          %p2448 = pneg %p2447
        $region54: #{tpu_custom_call.1} parent=39 // pred_check_branch
          %2450 = sbr.rel (%p2448) target = $region56
        $region55: #{tpu_custom_call.1} parent=39 // pred_region
          %2451 = vst.msk [vmem:[#allocation2] sm:$0xff] %vm427, %v2431
          %2452 = vst.msk [vmem:[#allocation2 + $0x8] sm:$0xff] %vm427, %v2432
          %2453 = vst.msk [vmem:[#allocation2 + $0x10] sm:$0xff] %vm427, %v2433
          %2454 = vst.msk [vmem:[#allocation2 + $0x18] sm:$0xff] %vm427, %v2434
          %2455 = vst.msk [vmem:[#allocation2 + $0x20] sm:$0xff] %vm427, %v2435
          %2456 = vst.msk [vmem:[#allocation2 + $0x28] sm:$0xff] %vm427, %v2436
          %2457 = vst.msk [vmem:[#allocation2 + $0x30] sm:$0xff] %vm427, %v2437
          %2458 = vst.msk [vmem:[#allocation2 + $0x38] sm:$0xff] %vm427, %v2438
          %2459 = vst.msk [vmem:[#allocation2 + $0x40] sm:$0xff] %vm427, %v2439
          %2460 = vst.msk [vmem:[#allocation2 + $0x48] sm:$0xff] %vm427, %v2440
          %2461 = vst.msk [vmem:[#allocation2 + $0x50] sm:$0xff] %vm427, %v2441
          %2462 = vst.msk [vmem:[#allocation2 + $0x58] sm:$0xff] %vm427, %v2442
          %2463 = vst.msk [vmem:[#allocation2 + $0x60] sm:$0xff] %vm427, %v2443
          %2464 = vst.msk [vmem:[#allocation2 + $0x68] sm:$0xff] %vm427, %v2444
          %2465 = vst.msk [vmem:[#allocation2 + $0x70] sm:$0xff] %vm427, %v2445
          %2466 = vst.msk [vmem:[#allocation2 + $0x78] sm:$0xff] %vm427, %v2446
        $region56: #{tpu_custom_call.1} parent=39 // pred_fallthru
          _
        %p2467 = scmp.eq.s32.totalorder %s30, 3
        // Predicated region
        $region57: #{tpu_custom_call.1} parent=39 // pred_check
          %p2468 = pneg %p2467
        $region58: #{tpu_custom_call.1} parent=39 // pred_check_branch
          %2470 = sbr.rel (%p2468) target = $region60
        $region59: #{tpu_custom_call.1} parent=39 // pred_region
          %v2471 = vmax.f32 %v2431, 0.0
          %v2472 = vmax.f32 %v2432, 0.0
          %v2473 = vmax.f32 %v2433, 0.0
          %v2474 = vmax.f32 %v2434, 0.0
          %v2475 = vmax.f32 %v2435, 0.0
          %v2476 = vmax.f32 %v2436, 0.0
          %v2477 = vmax.f32 %v2437, 0.0
          %v2478 = vmax.f32 %v2438, 0.0
          %v2479 = vmax.f32 %v2439, 0.0
          %v2480 = vmax.f32 %v2440, 0.0
          %v2481 = vmax.f32 %v2441, 0.0
          %v2482 = vmax.f32 %v2442, 0.0
          %v2483 = vmax.f32 %v2443, 0.0
          %v2484 = vmax.f32 %v2444, 0.0
          %v2485 = vmax.f32 %v2445, 0.0
          %v2486 = vmax.f32 %v2446, 0.0
          %2487 = vst [vmem:[%s335] sm:$0xff] %v2471
          %2488 = vst [vmem:[%s335 + $0x8] sm:$0xff] %v2472
          %2489 = vst [vmem:[%s335 + $0x10] sm:$0xff] %v2473
          %2490 = vst [vmem:[%s335 + $0x18] sm:$0xff] %v2474
          %2491 = vst [vmem:[%s335 + $0x20] sm:$0xff] %v2475
          %2492 = vst [vmem:[%s335 + $0x28] sm:$0xff] %v2476
          %2493 = vst [vmem:[%s335 + $0x30] sm:$0xff] %v2477
          %2494 = vst [vmem:[%s335 + $0x38] sm:$0xff] %v2478
          %2495 = vst [vmem:[%s335 + $0x40] sm:$0xff] %v2479
          %2496 = vst [vmem:[%s335 + $0x48] sm:$0xff] %v2480
          %2497 = vst [vmem:[%s335 + $0x50] sm:$0xff] %v2481
          %2498 = vst [vmem:[%s335 + $0x58] sm:$0xff] %v2482
          %2499 = vst [vmem:[%s335 + $0x60] sm:$0xff] %v2483
          %2500 = vst [vmem:[%s335 + $0x68] sm:$0xff] %v2484
          %2501 = vst [vmem:[%s335 + $0x70] sm:$0xff] %v2485
          %2502 = vst [vmem:[%s335 + $0x78] sm:$0xff] %v2486
        $region60: #{tpu_custom_call.1} parent=39 // pred_fallthru
          _
        %s2503 = sand.u32 %s175, 1
        %s2504 = scalar_lea.sflag [#allocation6], %s2503
        %s2505 = sand.u32 %s175, 1
        %s2506 = smul.addr %s2505, 128
        %s2507 = scalar_lea.vmem [#allocation9], %s2506
        // Predicated region
        $region61: #{tpu_custom_call.1} parent=39 // pred_check
          %p2508 = pneg %p185
        $region62: #{tpu_custom_call.1} parent=39 // pred_check_branch
          %2510 = sbr.rel (%p2508) target = $region64
        $region63: #{tpu_custom_call.1} parent=39 // pred_region
          %s2512 = ssub.s32 2048, 2048
          %2513 = vsyncadd %s2504, %s2512
          %s2514 = smul.addr %s29, 16
          %s2515 = smul.addr %s2514, 128
          %s2516 = scalar_lea.hbm %s5, %s2515
          %s2517 = sshll.u32 %s2507, 4
          %s2518 = int_to_ptr.vmem [resolvable:$true] %s2517
          %2523 = dma.vmem_to_hbm [thread:$0]  %s2518, 2048, %s2516, %s2504, 128, 128, 8
        $region64: #{tpu_custom_call.1} parent=39 // pred_fallthru
          _
      $region40: #{tpu_custom_call.1} parent=5 // pred_fallthru
        _
      %p2524 = scmp.le.s32.totalorder 2, %s20
      // Predicated region
      $region65: #{tpu_custom_call.1} parent=5 // pred_check
        %p2525 = pneg %p2524
      $region66: #{tpu_custom_call.1} parent=5 // pred_check_branch
        %2527 = sbr.rel (%p2525) target = $region68
      $region67: #{tpu_custom_call.1} parent=5 // pred_region
        %s2528 = ssub.s32 %s20, 2
        // Predicated region
        $region69: #{tpu_custom_call.1} parent=67 // pred_check
          %p2529 = pneg %p191
        $region70: #{tpu_custom_call.1} parent=67 // pred_check_branch
          %2531 = sbr.rel (%p2529) target = $region72
        $region71: #{tpu_custom_call.1} parent=67 // pred_region
          %s2532 = sand.u32 %s176, 1
          %s2533 = scalar_lea.sflag [#allocation6], %s2532
          %s2534 = sand.u32 %s176, 1
          %s2535 = smul.addr %s2534, 128
          %s2536 = scalar_lea.vmem [#allocation9], %s2535
          %2537 = dma.done %s2533, 2048
        $region72: #{tpu_custom_call.1} parent=67 // pred_fallthru
          _
      $region68: #{tpu_custom_call.1} parent=5 // pred_fallthru
        _
    $region6: #{tpu_custom_call.1} parent=1 // loop_footer
      %s24 = sadd.s32 1, %s20
    $region7: #{tpu_custom_call.1} parent=1 // loop_footer_branch
      %19 = sbr.rel target = $region3
    $region8: #{tpu_custom_call.1} parent=1 // loop_exit
      _
    %2538 = vsyncpa [#allocation5], 1
    %s2539 = scalar_lea.sflag [#allocation5], 1
    %2540 = vsyncpa %s2539, 1
    %2541 = vsyncpa [#allocation8], 1
    %s2542 = scalar_lea.sflag [#allocation8], 1
    %2543 = vsyncpa %s2542, 1
    %2544 = vsyncpa [#allocation6], 1
    %s2545 = scalar_lea.sflag [#allocation6], 1
    %2546 = vsyncpa %s2545, 1

</llo_original>
